<compile_context>
chip_gen: v5e
topology: v5e:2x2
jax: 0.10.0
libtpu: 0.0.40
codegen_flags: <defaults>
</compile_context>

<pallas_src>
import functools

import jax
import jax.numpy as jnp
from jax.experimental import pallas as pl
from jax.experimental.pallas import tpu as pltpu


# ----------------------------------------------------------------------------
# Fused kernel: num_layers LSTM layers (wavefront over time) + relu + linear.
# Arg order: x(TB,I), [w_ih(in,4H), w_hh(H,4H), bias(1,4H)] * L  (gate columns
# already permuted to [i, f, o, g]), w_lin(H,128), b_lin(1,128),
# out(TB,128), gates0_scr(TB,4H), hseq_scr(TB,H).
# ----------------------------------------------------------------------------
def _make_fused_lstm_kernel(T, B, I, H, OP, num_layers):
    H3 = 3 * H

    def kernel(*refs):
        x_ref = refs[0]
        layer_refs = refs[1:1 + 3 * num_layers]
        wlin_ref = refs[1 + 3 * num_layers]
        blin_ref = refs[2 + 3 * num_layers]
        out_ref = refs[3 + 3 * num_layers]
        gates0_scr = refs[4 + 3 * num_layers]   # (TB, 4H) f32, layer-0 pre-acts
        hseq_scr = refs[5 + 3 * num_layers]     # (TB, H)  f32, top-layer h seq

        # Layer-0 input projection hoisted over ALL timesteps at once (M = T*B),
        # bias folded in.  Off the recurrent critical path.
        gates0_scr[...] = (
            jnp.dot(x_ref[...], layer_refs[0][...],
                    preferred_element_type=jnp.float32)
            + layer_refs[2][...]
        )

        # Recurrent weights / biases loaded once per call (resident).
        whh = [layer_refs[3 * l + 1][...] for l in range(num_layers)]
        wih = [None] + [layer_refs[3 * l + 0][...] for l in range(1, num_layers)]
        bias = [None] + [layer_refs[3 * l + 2][...] for l in range(1, num_layers)]

        h = [jnp.zeros((B, H), jnp.float32) for _ in range(num_layers)]
        c = [jnp.zeros((B, H), jnp.float32) for _ in range(num_layers)]

        # Wavefront: `for t: for l:` — layer l at step t uses layer l-1's h_t
        # (fresh, same iteration) and its own h/c from step t-1.  Static unroll
        # (T, L small & static) exposes the cross-layer overlap to the scheduler.
        for t in range(T):
            for l in range(num_layers):
                if l == 0:
                    g = gates0_scr[t * B:(t + 1) * B, :] + jnp.dot(
                        h[0], whh[0], preferred_element_type=jnp.float32)
                else:
                    g = (bias[l]
                         + jnp.dot(h[l - 1], wih[l],
                                   preferred_element_type=jnp.float32)
                         + jnp.dot(h[l], whh[l],
                                   preferred_element_type=jnp.float32))
                # Gate columns are pre-permuted to [i, f, o | g]:
                # one sigmoid over 3H lanes, one tanh over H lanes (4H EUP elems
                # per step instead of 8H).
                sg = jax.nn.sigmoid(g[:, :H3])
                tg = jnp.tanh(g[:, H3:])
                i_g = sg[:, 0 * H:1 * H]
                f_g = sg[:, 1 * H:2 * H]
                o_g = sg[:, 2 * H:3 * H]
                c[l] = f_g * c[l] + i_g * tg
                h[l] = o_g * jnp.tanh(c[l])
            # Only the TOP layer's h feeds the epilogue; these stores are off the
            # recurrent critical path (nothing reads hseq_scr until after the loop).
            hseq_scr[t * B:(t + 1) * B, :] = h[num_layers - 1]

        # Fused epilogue: out = relu(h_seq) @ W_pad + b_pad, one lane-dense
        # (TB, 128) matmul and a single unmasked store of the whole output slab.
        y = jnp.dot(jnp.maximum(hseq_scr[...], 0.0), wlin_ref[...],
                    preferred_element_type=jnp.float32) + blin_ref[...]
        out_ref[...] = y.astype(out_ref.dtype)

    return kernel


def _fused_lstm_call(x_2d, flat_weights, w_lin, b_lin, *, T, B, I, H, O, num_layers):
    kernel = _make_fused_lstm_kernel(T, B, I, H, O, num_layers)
    n_inputs = 1 + 3 * num_layers + 2
    vmem = pltpu.MemorySpace.VMEM
    return pl.pallas_call(
        kernel,
        out_shape=jax.ShapeDtypeStruct((T * B, O), jnp.float32),
        in_specs=[pl.BlockSpec(memory_space=vmem)] * n_inputs,
        out_specs=pl.BlockSpec(memory_space=vmem),
        scratch_shapes=[
            pltpu.VMEM((T * B, 4 * H), jnp.float32),   # layer-0 gate pre-activations
            pltpu.VMEM((T * B, H), jnp.float32),       # top-layer h sequence
        ],
    )(x_2d, *flat_weights, w_lin, b_lin)


# ----------------------------------------------------------------------------
# Parameter packing (done ONCE, outside the per-call path): gate-column
# permutation [i,f,g,o] -> [i,f,o,g] and lane-dense padding of the linear head.
# ----------------------------------------------------------------------------
def pack_kernel_params(params, out_pad=128):
    H = params["lstm"][0]["w_hh_t"].shape[0]
    O = params["linear"]["w_t"].shape[1]

    def permute_gates(w):  # last axis is 4H in PyTorch order [i, f, g, o]
        i_g, f_g, g_g, o_g = jnp.split(w, 4, axis=-1)
        return jnp.concatenate([i_g, f_g, o_g, g_g], axis=-1)

    flat = []
    for p in params["lstm"]:
        flat += [permute_gates(p["w_ih_t"]),
                 permute_gates(p["w_hh_t"]),
                 permute_gates(p["bias"])]

    w_lin_pad = jnp.zeros((H, out_pad), jnp.float32).at[:, :O].set(params["linear"]["w_t"])
    b_lin_pad = jnp.zeros((1, out_pad), jnp.float32).at[:, :O].set(params["linear"]["b"])
    return {"lstm": tuple(flat), "w_lin": w_lin_pad, "b_lin": b_lin_pad}


# ----------------------------------------------------------------------------
# Full model forward (wrapper does layout plumbing in XLA).
# ----------------------------------------------------------------------------
@functools.partial(jax.jit, static_argnames=("num_layers", "out_features"))
def lstm_model_forward(x_btf, packed, num_layers, out_features=3):
    # x_btf: (B, T, input_size), PyTorch batch_first convention.
    B, T, I = x_btf.shape
    H = packed["w_lin"].shape[0]
    O_pad = packed["w_lin"].shape[1]

    # time-major, flattened to (T*B, I): row t*B + b holds (t, b).
    x_2d = jnp.transpose(x_btf, (1, 0, 2)).reshape(T * B, I)

    out_2d = _fused_lstm_call(
        x_2d, list(packed["lstm"]), packed["w_lin"], packed["b_lin"],
        T=T, B=B, I=I, H=H, O=O_pad, num_layers=num_layers)

    out = jnp.transpose(out_2d.reshape(T, B, O_pad), (1, 0, 2))   # (B, T, O_pad)
    return out[:, :, :out_features]


def init_params(key, input_size, hidden_size, num_layers, out_features=3):
    """PyTorch-layout params, uniform(-1/sqrt(H), 1/sqrt(H)) like nn.LSTM/Linear."""
    params = {"lstm": []}
    bound = 1.0 / jnp.sqrt(jnp.float32(hidden_size))
    for layer in range(num_layers):
        in_dim = input_size if layer == 0 else hidden_size
        key, k1, k2, k3, k4 = jax.random.split(key, 5)
        w_ih = jax.random.uniform(k1, (4 * hidden_size, in_dim), jnp.float32, -bound, bound)
        w_hh = jax.random.uniform(k2, (4 * hidden_size, hidden_size), jnp.float32, -bound, bound)
        b_ih = jax.random.uniform(k3, (4 * hidden_size,), jnp.float32, -bound, bound)
        b_hh = jax.random.uniform(k4, (4 * hidden_size,), jnp.float32, -bound, bound)
        params["lstm"].append({
            "w_ih_t": w_ih.T,                       # (in_dim, 4H), PyTorch gate order
            "w_hh_t": w_hh.T,                       # (H, 4H)
            "bias": (b_ih + b_hh)[None, :],         # (1, 4H)  (PyTorch adds both)
        })
    key, k5, k6 = jax.random.split(key, 3)
    lin_bound = 1.0 / jnp.sqrt(jnp.float32(hidden_size))
    w = jax.random.uniform(k5, (out_features, hidden_size), jnp.float32, -lin_bound, lin_bound)
    b = jax.random.uniform(k6, (out_features,), jnp.float32, -lin_bound, lin_bound)
    params["linear"] = {"w_t": w.T, "b": b[None, :]}
    return params


# ----------------------------------------------------------------------------
# Pure-JAX reference (PyTorch-layout params, PyTorch gate order) for validation.
# ----------------------------------------------------------------------------
def reference_forward(x_btf, params, num_layers):
    B, T, _ = x_btf.shape
    h_seq = x_btf
    for layer in range(num_layers):
        p = params["lstm"][layer]
        H = p["w_hh_t"].shape[0]
        h = jnp.zeros((B, H), jnp.float32)
        c = jnp.zeros((B, H), jnp.float32)
        outs = []
        for t in range(T):
            gates = h_seq[:, t] @ p["w_ih_t"] + h @ p["w_hh_t"] + p["bias"]
            i_g = jax.nn.sigmoid(gates[:, 0 * H:1 * H])
            f_g = jax.nn.sigmoid(gates[:, 1 * H:2 * H])
            g_g = jnp.tanh(gates[:, 2 * H:3 * H])
            o_g = jax.nn.sigmoid(gates[:, 3 * H:4 * H])
            c = f_g * c + i_g * g_g
            h = o_g * jnp.tanh(c)
            outs.append(h)
        h_seq = jnp.stack(outs, axis=1)
    return jnp.maximum(h_seq, 0.0) @ params["linear"]["w_t"] + params["linear"]["b"]


if __name__ == "__main__":
    B, T = 2, 8
    input_size, hidden_size, num_layers = 16, 32, 2

    key = jax.random.PRNGKey(0)
    k_params, k_x = jax.random.split(key)
    params = init_params(k_params, input_size, hidden_size, num_layers)
    packed = pack_kernel_params(params)
    x = jax.random.normal(k_x, (B, T, input_size), jnp.float32)

    out = lstm_model_forward(x, packed, num_layers)
    out = jax.block_until_ready(out)
    assert out.shape == (B, T, 3), out.shape

    ref = reference_forward(x, params, num_layers)
    assert jnp.allclose(out, ref, atol=1e-4, rtol=1e-4), float(jnp.max(jnp.abs(out - ref)))

    print("KERNEL_OK")
</pallas_src>

<mosaic_0001>
module attributes {stable_mosaic.version = 11 : i64} {
  func.func @kernel(%arg0: memref<16x16xf32, #tpu.memory_space<vmem>>, %arg1: memref<16x128xf32, #tpu.memory_space<vmem>>, %arg2: memref<32x128xf32, #tpu.memory_space<vmem>>, %arg3: memref<1x128xf32, #tpu.memory_space<vmem>>, %arg4: memref<32x128xf32, #tpu.memory_space<vmem>>, %arg5: memref<32x128xf32, #tpu.memory_space<vmem>>, %arg6: memref<1x128xf32, #tpu.memory_space<vmem>>, %arg7: memref<32x128xf32, #tpu.memory_space<vmem>>, %arg8: memref<1x128xf32, #tpu.memory_space<vmem>>, %arg9: memref<16x128xf32, #tpu.memory_space<vmem>>, %arg10: memref<16x128xf32, #tpu.memory_space<vmem>>, %arg11: memref<16x32xf32, #tpu.memory_space<vmem>>) attributes {dimension_semantics = [], scalar_prefetch = 0 : i64, scratch_operands = 2 : i64, tpu.core_type = #tpu.core_type<tc>} {
    %c0 = arith.constant 0 : index
    %c0_0 = arith.constant 0 : index
    %0 = vector.load %arg0[%c0, %c0_0] : memref<16x16xf32, #tpu.memory_space<vmem>>, vector<16x16xf32>
    %c0_1 = arith.constant 0 : index
    %c0_2 = arith.constant 0 : index
    %1 = vector.load %arg1[%c0_1, %c0_2] : memref<16x128xf32, #tpu.memory_space<vmem>>, vector<16x128xf32>
    %cst = arith.constant dense<0.000000e+00> : vector<16x128xf32>
    %2 = tpu.matmul %0, %1, %cst {dimension_numbers = #tpu.dot_dimension_numbers<[1], [0], [0], [1], [0, 0, 1, 1], [], []>} : vector<16x16xf32>, vector<16x128xf32>, vector<16x128xf32> -> vector<16x128xf32>
    %c0_3 = arith.constant 0 : index
    %c0_4 = arith.constant 0 : index
    %3 = vector.load %arg3[%c0_3, %c0_4] : memref<1x128xf32, #tpu.memory_space<vmem>>, vector<1x128xf32>
    %4 = vector.broadcast %3 : vector<1x128xf32> to vector<16x128xf32>
    %5 = arith.addf %2, %4 : vector<16x128xf32>
    %c0_5 = arith.constant 0 : index
    %c0_6 = arith.constant 0 : index
    %6 = vector.load %arg10[%c0_5, %c0_6] : memref<16x128xf32, #tpu.memory_space<vmem>>, vector<16x128xf32>
    tpu.vector_store %arg10[%c0_5, %c0_6], %5 {strides = array<i32>} : memref<16x128xf32, #tpu.memory_space<vmem>>, vector<16x128xf32>,
    %c0_7 = arith.constant 0 : index
    %c0_8 = arith.constant 0 : index
    %7 = vector.load %arg2[%c0_7, %c0_8] : memref<32x128xf32, #tpu.memory_space<vmem>>, vector<32x128xf32>
    %c0_9 = arith.constant 0 : index
    %c0_10 = arith.constant 0 : index
    %8 = vector.load %arg5[%c0_9, %c0_10] : memref<32x128xf32, #tpu.memory_space<vmem>>, vector<32x128xf32>
    %c0_11 = arith.constant 0 : index
    %c0_12 = arith.constant 0 : index
    %9 = vector.load %arg4[%c0_11, %c0_12] : memref<32x128xf32, #tpu.memory_space<vmem>>, vector<32x128xf32>
    %c0_13 = arith.constant 0 : index
    %c0_14 = arith.constant 0 : index
    %10 = vector.load %arg6[%c0_13, %c0_14] : memref<1x128xf32, #tpu.memory_space<vmem>>, vector<1x128xf32>
    %cst_15 = arith.constant 0.000000e+00 : f32
    %11 = vector.broadcast %cst_15 : f32 to vector<2x32xf32>
    %cst_16 = arith.constant 0.000000e+00 : f32
    %12 = vector.broadcast %cst_16 : f32 to vector<2x32xf32>
    %cst_17 = arith.constant 0.000000e+00 : f32
    %13 = vector.broadcast %cst_17 : f32 to vector<2x32xf32>
    %cst_18 = arith.constant 0.000000e+00 : f32
    %14 = vector.broadcast %cst_18 : f32 to vector<2x32xf32>
    %c0_19 = arith.constant 0 : index
    %c0_20 = arith.constant 0 : index
    %15 = vector.load %arg10[%c0_19, %c0_20] : memref<16x128xf32, #tpu.memory_space<vmem>>, vector<2x128xf32>
    %cst_21 = arith.constant dense<0.000000e+00> : vector<2x128xf32>
    %16 = tpu.matmul %11, %7, %cst_21 {dimension_numbers = #tpu.dot_dimension_numbers<[1], [0], [0], [1], [0, 0, 1, 1], [], []>} : vector<2x32xf32>, vector<32x128xf32>, vector<2x128xf32> -> vector<2x128xf32>
    %17 = arith.addf %15, %16 : vector<2x128xf32>
    %18 = vector.extract_strided_slice %17 {offsets = [0, 0], sizes = [2, 96], strides = [1, 1]} : vector<2x128xf32> to vector<2x96xf32>
    %19 = arith.negf %18 : vector<2x96xf32>
    %20 = math.exp %19 : vector<2x96xf32>
    %cst_22 = arith.constant 1.000000e+00 : f32
    %21 = vector.broadcast %cst_22 : f32 to vector<2x96xf32>
    %22 = arith.addf %21, %20 : vector<2x96xf32>
    %23 = arith.divf %21, %22 : vector<2x96xf32>
    %24 = vector.extract_strided_slice %17 {offsets = [0, 96], sizes = [2, 32], strides = [1, 1]} : vector<2x128xf32> to vector<2x32xf32>
    %25 = math.tanh %24 : vector<2x32xf32>
    %26 = vector.extract_strided_slice %23 {offsets = [0, 0], sizes = [2, 32], strides = [1, 1]} : vector<2x96xf32> to vector<2x32xf32>
    %27 = vector.extract_strided_slice %23 {offsets = [0, 32], sizes = [2, 32], strides = [1, 1]} : vector<2x96xf32> to vector<2x32xf32>
    %28 = vector.extract_strided_slice %23 {offsets = [0, 64], sizes = [2, 32], strides = [1, 1]} : vector<2x96xf32> to vector<2x32xf32>
    %29 = arith.mulf %27, %13 : vector<2x32xf32>
    %30 = arith.mulf %26, %25 : vector<2x32xf32>
    %31 = arith.addf %29, %30 : vector<2x32xf32>
    %32 = math.tanh %31 : vector<2x32xf32>
    %33 = arith.mulf %28, %32 : vector<2x32xf32>
    %cst_23 = arith.constant dense<0.000000e+00> : vector<2x128xf32>
    %34 = tpu.matmul %33, %9, %cst_23 {dimension_numbers = #tpu.dot_dimension_numbers<[1], [0], [0], [1], [0, 0, 1, 1], [], []>} : vector<2x32xf32>, vector<32x128xf32>, vector<2x128xf32> -> vector<2x128xf32>
    %35 = vector.broadcast %10 : vector<1x128xf32> to vector<2x128xf32>
    %36 = arith.addf %35, %34 : vector<2x128xf32>
    %cst_24 = arith.constant dense<0.000000e+00> : vector<2x128xf32>
    %37 = tpu.matmul %12, %8, %cst_24 {dimension_numbers = #tpu.dot_dimension_numbers<[1], [0], [0], [1], [0, 0, 1, 1], [], []>} : vector<2x32xf32>, vector<32x128xf32>, vector<2x128xf32> -> vector<2x128xf32>
    %38 = arith.addf %36, %37 : vector<2x128xf32>
    %39 = vector.extract_strided_slice %38 {offsets = [0, 0], sizes = [2, 96], strides = [1, 1]} : vector<2x128xf32> to vector<2x96xf32>
    %40 = arith.negf %39 : vector<2x96xf32>
    %41 = math.exp %40 : vector<2x96xf32>
    %cst_25 = arith.constant 1.000000e+00 : f32
    %42 = vector.broadcast %cst_25 : f32 to vector<2x96xf32>
    %43 = arith.addf %42, %41 : vector<2x96xf32>
    %44 = arith.divf %42, %43 : vector<2x96xf32>
    %45 = vector.extract_strided_slice %38 {offsets = [0, 96], sizes = [2, 32], strides = [1, 1]} : vector<2x128xf32> to vector<2x32xf32>
    %46 = math.tanh %45 : vector<2x32xf32>
    %47 = vector.extract_strided_slice %44 {offsets = [0, 0], sizes = [2, 32], strides = [1, 1]} : vector<2x96xf32> to vector<2x32xf32>
    %48 = vector.extract_strided_slice %44 {offsets = [0, 32], sizes = [2, 32], strides = [1, 1]} : vector<2x96xf32> to vector<2x32xf32>
    %49 = vector.extract_strided_slice %44 {offsets = [0, 64], sizes = [2, 32], strides = [1, 1]} : vector<2x96xf32> to vector<2x32xf32>
    %50 = arith.mulf %48, %14 : vector<2x32xf32>
    %51 = arith.mulf %47, %46 : vector<2x32xf32>
    %52 = arith.addf %50, %51 : vector<2x32xf32>
    %53 = math.tanh %52 : vector<2x32xf32>
    %54 = arith.mulf %49, %53 : vector<2x32xf32>
    %c0_26 = arith.constant 0 : index
    %c0_27 = arith.constant 0 : index
    %55 = vector.load %arg11[%c0_26, %c0_27] : memref<16x32xf32, #tpu.memory_space<vmem>>, vector<2x32xf32>
    tpu.vector_store %arg11[%c0_26, %c0_27], %54 {strides = array<i32>} : memref<16x32xf32, #tpu.memory_space<vmem>>, vector<2x32xf32>,
    %c2 = arith.constant 2 : index
    %c0_28 = arith.constant 0 : index
    %56 = vector.load %arg10[%c2, %c0_28] : memref<16x128xf32, #tpu.memory_space<vmem>>, vector<2x128xf32>
    %cst_29 = arith.constant dense<0.000000e+00> : vector<2x128xf32>
    %57 = tpu.matmul %33, %7, %cst_29 {dimension_numbers = #tpu.dot_dimension_numbers<[1], [0], [0], [1], [0, 0, 1, 1], [], []>} : vector<2x32xf32>, vector<32x128xf32>, vector<2x128xf32> -> vector<2x128xf32>
    %58 = arith.addf %56, %57 : vector<2x128xf32>
    %59 = vector.extract_strided_slice %58 {offsets = [0, 0], sizes = [2, 96], strides = [1, 1]} : vector<2x128xf32> to vector<2x96xf32>
    %60 = arith.negf %59 : vector<2x96xf32>
    %61 = math.exp %60 : vector<2x96xf32>
    %cst_30 = arith.constant 1.000000e+00 : f32
    %62 = vector.broadcast %cst_30 : f32 to vector<2x96xf32>
    %63 = arith.addf %62, %61 : vector<2x96xf32>
    %64 = arith.divf %62, %63 : vector<2x96xf32>
    %65 = vector.extract_strided_slice %58 {offsets = [0, 96], sizes = [2, 32], strides = [1, 1]} : vector<2x128xf32> to vector<2x32xf32>
    %66 = math.tanh %65 : vector<2x32xf32>
    %67 = vector.extract_strided_slice %64 {offsets = [0, 0], sizes = [2, 32], strides = [1, 1]} : vector<2x96xf32> to vector<2x32xf32>
    %68 = vector.extract_strided_slice %64 {offsets = [0, 32], sizes = [2, 32], strides = [1, 1]} : vector<2x96xf32> to vector<2x32xf32>
    %69 = vector.extract_strided_slice %64 {offsets = [0, 64], sizes = [2, 32], strides = [1, 1]} : vector<2x96xf32> to vector<2x32xf32>
    %70 = arith.mulf %68, %31 : vector<2x32xf32>
    %71 = arith.mulf %67, %66 : vector<2x32xf32>
    %72 = arith.addf %70, %71 : vector<2x32xf32>
    %73 = math.tanh %72 : vector<2x32xf32>
    %74 = arith.mulf %69, %73 : vector<2x32xf32>
    %cst_31 = arith.constant dense<0.000000e+00> : vector<2x128xf32>
    %75 = tpu.matmul %74, %9, %cst_31 {dimension_numbers = #tpu.dot_dimension_numbers<[1], [0], [0], [1], [0, 0, 1, 1], [], []>} : vector<2x32xf32>, vector<32x128xf32>, vector<2x128xf32> -> vector<2x128xf32>
    %76 = vector.broadcast %10 : vector<1x128xf32> to vector<2x128xf32>
    %77 = arith.addf %76, %75 : vector<2x128xf32>
    %cst_32 = arith.constant dense<0.000000e+00> : vector<2x128xf32>
    %78 = tpu.matmul %54, %8, %cst_32 {dimension_numbers = #tpu.dot_dimension_numbers<[1], [0], [0], [1], [0, 0, 1, 1], [], []>} : vector<2x32xf32>, vector<32x128xf32>, vector<2x128xf32> -> vector<2x128xf32>
    %79 = arith.addf %77, %78 : vector<2x128xf32>
    %80 = vector.extract_strided_slice %79 {offsets = [0, 0], sizes = [2, 96], strides = [1, 1]} : vector<2x128xf32> to vector<2x96xf32>
    %81 = arith.negf %80 : vector<2x96xf32>
    %82 = math.exp %81 : vector<2x96xf32>
    %cst_33 = arith.constant 1.000000e+00 : f32
    %83 = vector.broadcast %cst_33 : f32 to vector<2x96xf32>
    %84 = arith.addf %83, %82 : vector<2x96xf32>
    %85 = arith.divf %83, %84 : vector<2x96xf32>
    %86 = vector.extract_strided_slice %79 {offsets = [0, 96], sizes = [2, 32], strides = [1, 1]} : vector<2x128xf32> to vector<2x32xf32>
    %87 = math.tanh %86 : vector<2x32xf32>
    %88 = vector.extract_strided_slice %85 {offsets = [0, 0], sizes = [2, 32], strides = [1, 1]} : vector<2x96xf32> to vector<2x32xf32>
    %89 = vector.extract_strided_slice %85 {offsets = [0, 32], sizes = [2, 32], strides = [1, 1]} : vector<2x96xf32> to vector<2x32xf32>
    %90 = vector.extract_strided_slice %85 {offsets = [0, 64], sizes = [2, 32], strides = [1, 1]} : vector<2x96xf32> to vector<2x32xf32>
    %91 = arith.mulf %89, %52 : vector<2x32xf32>
    %92 = arith.mulf %88, %87 : vector<2x32xf32>
    %93 = arith.addf %91, %92 : vector<2x32xf32>
    %94 = math.tanh %93 : vector<2x32xf32>
    %95 = arith.mulf %90, %94 : vector<2x32xf32>
    %c2_34 = arith.constant 2 : index
    %c0_35 = arith.constant 0 : index
    %96 = vector.load %arg11[%c2_34, %c0_35] : memref<16x32xf32, #tpu.memory_space<vmem>>, vector<2x32xf32>
    tpu.vector_store %arg11[%c2_34, %c0_35], %95 {strides = array<i32>} : memref<16x32xf32, #tpu.memory_space<vmem>>, vector<2x32xf32>,
    %c4 = arith.constant 4 : index
    %c0_36 = arith.constant 0 : index
    %97 = vector.load %arg10[%c4, %c0_36] : memref<16x128xf32, #tpu.memory_space<vmem>>, vector<2x128xf32>
    %cst_37 = arith.constant dense<0.000000e+00> : vector<2x128xf32>
    %98 = tpu.matmul %74, %7, %cst_37 {dimension_numbers = #tpu.dot_dimension_numbers<[1], [0], [0], [1], [0, 0, 1, 1], [], []>} : vector<2x32xf32>, vector<32x128xf32>, vector<2x128xf32> -> vector<2x128xf32>
    %99 = arith.addf %97, %98 : vector<2x128xf32>
    %100 = vector.extract_strided_slice %99 {offsets = [0, 0], sizes = [2, 96], strides = [1, 1]} : vector<2x128xf32> to vector<2x96xf32>
    %101 = arith.negf %100 : vector<2x96xf32>
    %102 = math.exp %101 : vector<2x96xf32>
    %cst_38 = arith.constant 1.000000e+00 : f32
    %103 = vector.broadcast %cst_38 : f32 to vector<2x96xf32>
    %104 = arith.addf %103, %102 : vector<2x96xf32>
    %105 = arith.divf %103, %104 : vector<2x96xf32>
    %106 = vector.extract_strided_slice %99 {offsets = [0, 96], sizes = [2, 32], strides = [1, 1]} : vector<2x128xf32> to vector<2x32xf32>
    %107 = math.tanh %106 : vector<2x32xf32>
    %108 = vector.extract_strided_slice %105 {offsets = [0, 0], sizes = [2, 32], strides = [1, 1]} : vector<2x96xf32> to vector<2x32xf32>
    %109 = vector.extract_strided_slice %105 {offsets = [0, 32], sizes = [2, 32], strides = [1, 1]} : vector<2x96xf32> to vector<2x32xf32>
    %110 = vector.extract_strided_slice %105 {offsets = [0, 64], sizes = [2, 32], strides = [1, 1]} : vector<2x96xf32> to vector<2x32xf32>
    %111 = arith.mulf %109, %72 : vector<2x32xf32>
    %112 = arith.mulf %108, %107 : vector<2x32xf32>
    %113 = arith.addf %111, %112 : vector<2x32xf32>
    %114 = math.tanh %113 : vector<2x32xf32>
    %115 = arith.mulf %110, %114 : vector<2x32xf32>
    %cst_39 = arith.constant dense<0.000000e+00> : vector<2x128xf32>
    %116 = tpu.matmul %115, %9, %cst_39 {dimension_numbers = #tpu.dot_dimension_numbers<[1], [0], [0], [1], [0, 0, 1, 1], [], []>} : vector<2x32xf32>, vector<32x128xf32>, vector<2x128xf32> -> vector<2x128xf32>
    %117 = vector.broadcast %10 : vector<1x128xf32> to vector<2x128xf32>
    %118 = arith.addf %117, %116 : vector<2x128xf32>
    %cst_40 = arith.constant dense<0.000000e+00> : vector<2x128xf32>
    %119 = tpu.matmul %95, %8, %cst_40 {dimension_numbers = #tpu.dot_dimension_numbers<[1], [0], [0], [1], [0, 0, 1, 1], [], []>} : vector<2x32xf32>, vector<32x128xf32>, vector<2x128xf32> -> vector<2x128xf32>
    %120 = arith.addf %118, %119 : vector<2x128xf32>
    %121 = vector.extract_strided_slice %120 {offsets = [0, 0], sizes = [2, 96], strides = [1, 1]} : vector<2x128xf32> to vector<2x96xf32>
    %122 = arith.negf %121 : vector<2x96xf32>
    %123 = math.exp %122 : vector<2x96xf32>
    %cst_41 = arith.constant 1.000000e+00 : f32
    %124 = vector.broadcast %cst_41 : f32 to vector<2x96xf32>
    %125 = arith.addf %124, %123 : vector<2x96xf32>
    %126 = arith.divf %124, %125 : vector<2x96xf32>
    %127 = vector.extract_strided_slice %120 {offsets = [0, 96], sizes = [2, 32], strides = [1, 1]} : vector<2x128xf32> to vector<2x32xf32>
    %128 = math.tanh %127 : vector<2x32xf32>
    %129 = vector.extract_strided_slice %126 {offsets = [0, 0], sizes = [2, 32], strides = [1, 1]} : vector<2x96xf32> to vector<2x32xf32>
    %130 = vector.extract_strided_slice %126 {offsets = [0, 32], sizes = [2, 32], strides = [1, 1]} : vector<2x96xf32> to vector<2x32xf32>
    %131 = vector.extract_strided_slice %126 {offsets = [0, 64], sizes = [2, 32], strides = [1, 1]} : vector<2x96xf32> to vector<2x32xf32>
    %132 = arith.mulf %130, %93 : vector<2x32xf32>
    %133 = arith.mulf %129, %128 : vector<2x32xf32>
    %134 = arith.addf %132, %133 : vector<2x32xf32>
    %135 = math.tanh %134 : vector<2x32xf32>
    %136 = arith.mulf %131, %135 : vector<2x32xf32>
    %c4_42 = arith.constant 4 : index
    %c0_43 = arith.constant 0 : index
    %137 = vector.load %arg11[%c4_42, %c0_43] : memref<16x32xf32, #tpu.memory_space<vmem>>, vector<2x32xf32>
    tpu.vector_store %arg11[%c4_42, %c0_43], %136 {strides = array<i32>} : memref<16x32xf32, #tpu.memory_space<vmem>>, vector<2x32xf32>,
    %c6 = arith.constant 6 : index
    %c0_44 = arith.constant 0 : index
    %138 = vector.load %arg10[%c6, %c0_44] : memref<16x128xf32, #tpu.memory_space<vmem>>, vector<2x128xf32>
    %cst_45 = arith.constant dense<0.000000e+00> : vector<2x128xf32>
    %139 = tpu.matmul %115, %7, %cst_45 {dimension_numbers = #tpu.dot_dimension_numbers<[1], [0], [0], [1], [0, 0, 1, 1], [], []>} : vector<2x32xf32>, vector<32x128xf32>, vector<2x128xf32> -> vector<2x128xf32>
    %140 = arith.addf %138, %139 : vector<2x128xf32>
    %141 = vector.extract_strided_slice %140 {offsets = [0, 0], sizes = [2, 96], strides = [1, 1]} : vector<2x128xf32> to vector<2x96xf32>
    %142 = arith.negf %141 : vector<2x96xf32>
    %143 = math.exp %142 : vector<2x96xf32>
    %cst_46 = arith.constant 1.000000e+00 : f32
    %144 = vector.broadcast %cst_46 : f32 to vector<2x96xf32>
    %145 = arith.addf %144, %143 : vector<2x96xf32>
    %146 = arith.divf %144, %145 : vector<2x96xf32>
    %147 = vector.extract_strided_slice %140 {offsets = [0, 96], sizes = [2, 32], strides = [1, 1]} : vector<2x128xf32> to vector<2x32xf32>
    %148 = math.tanh %147 : vector<2x32xf32>
    %149 = vector.extract_strided_slice %146 {offsets = [0, 0], sizes = [2, 32], strides = [1, 1]} : vector<2x96xf32> to vector<2x32xf32>
    %150 = vector.extract_strided_slice %146 {offsets = [0, 32], sizes = [2, 32], strides = [1, 1]} : vector<2x96xf32> to vector<2x32xf32>
    %151 = vector.extract_strided_slice %146 {offsets = [0, 64], sizes = [2, 32], strides = [1, 1]} : vector<2x96xf32> to vector<2x32xf32>
    %152 = arith.mulf %150, %113 : vector<2x32xf32>
    %153 = arith.mulf %149, %148 : vector<2x32xf32>
    %154 = arith.addf %152, %153 : vector<2x32xf32>
    %155 = math.tanh %154 : vector<2x32xf32>
    %156 = arith.mulf %151, %155 : vector<2x32xf32>
    %cst_47 = arith.constant dense<0.000000e+00> : vector<2x128xf32>
    %157 = tpu.matmul %156, %9, %cst_47 {dimension_numbers = #tpu.dot_dimension_numbers<[1], [0], [0], [1], [0, 0, 1, 1], [], []>} : vector<2x32xf32>, vector<32x128xf32>, vector<2x128xf32> -> vector<2x128xf32>
    %158 = vector.broadcast %10 : vector<1x128xf32> to vector<2x128xf32>
    %159 = arith.addf %158, %157 : vector<2x128xf32>
    %cst_48 = arith.constant dense<0.000000e+00> : vector<2x128xf32>
    %160 = tpu.matmul %136, %8, %cst_48 {dimension_numbers = #tpu.dot_dimension_numbers<[1], [0], [0], [1], [0, 0, 1, 1], [], []>} : vector<2x32xf32>, vector<32x128xf32>, vector<2x128xf32> -> vector<2x128xf32>
    %161 = arith.addf %159, %160 : vector<2x128xf32>
    %162 = vector.extract_strided_slice %161 {offsets = [0, 0], sizes = [2, 96], strides = [1, 1]} : vector<2x128xf32> to vector<2x96xf32>
    %163 = arith.negf %162 : vector<2x96xf32>
    %164 = math.exp %163 : vector<2x96xf32>
    %cst_49 = arith.constant 1.000000e+00 : f32
    %165 = vector.broadcast %cst_49 : f32 to vector<2x96xf32>
    %166 = arith.addf %165, %164 : vector<2x96xf32>
    %167 = arith.divf %165, %166 : vector<2x96xf32>
    %168 = vector.extract_strided_slice %161 {offsets = [0, 96], sizes = [2, 32], strides = [1, 1]} : vector<2x128xf32> to vector<2x32xf32>
    %169 = math.tanh %168 : vector<2x32xf32>
    %170 = vector.extract_strided_slice %167 {offsets = [0, 0], sizes = [2, 32], strides = [1, 1]} : vector<2x96xf32> to vector<2x32xf32>
    %171 = vector.extract_strided_slice %167 {offsets = [0, 32], sizes = [2, 32], strides = [1, 1]} : vector<2x96xf32> to vector<2x32xf32>
    %172 = vector.extract_strided_slice %167 {offsets = [0, 64], sizes = [2, 32], strides = [1, 1]} : vector<2x96xf32> to vector<2x32xf32>
    %173 = arith.mulf %171, %134 : vector<2x32xf32>
    %174 = arith.mulf %170, %169 : vector<2x32xf32>
    %175 = arith.addf %173, %174 : vector<2x32xf32>
    %176 = math.tanh %175 : vector<2x32xf32>
    %177 = arith.mulf %172, %176 : vector<2x32xf32>
    %c6_50 = arith.constant 6 : index
    %c0_51 = arith.constant 0 : index
    %178 = vector.load %arg11[%c6_50, %c0_51] : memref<16x32xf32, #tpu.memory_space<vmem>>, vector<2x32xf32>
    tpu.vector_store %arg11[%c6_50, %c0_51], %177 {strides = array<i32>} : memref<16x32xf32, #tpu.memory_space<vmem>>, vector<2x32xf32>,
    %c8 = arith.constant 8 : index
    %c0_52 = arith.constant 0 : index
    %179 = vector.load %arg10[%c8, %c0_52] : memref<16x128xf32, #tpu.memory_space<vmem>>, vector<2x128xf32>
    %cst_53 = arith.constant dense<0.000000e+00> : vector<2x128xf32>
    %180 = tpu.matmul %156, %7, %cst_53 {dimension_numbers = #tpu.dot_dimension_numbers<[1], [0], [0], [1], [0, 0, 1, 1], [], []>} : vector<2x32xf32>, vector<32x128xf32>, vector<2x128xf32> -> vector<2x128xf32>
    %181 = arith.addf %179, %180 : vector<2x128xf32>
    %182 = vector.extract_strided_slice %181 {offsets = [0, 0], sizes = [2, 96], strides = [1, 1]} : vector<2x128xf32> to vector<2x96xf32>
    %183 = arith.negf %182 : vector<2x96xf32>
    %184 = math.exp %183 : vector<2x96xf32>
    %cst_54 = arith.constant 1.000000e+00 : f32
    %185 = vector.broadcast %cst_54 : f32 to vector<2x96xf32>
    %186 = arith.addf %185, %184 : vector<2x96xf32>
    %187 = arith.divf %185, %186 : vector<2x96xf32>
    %188 = vector.extract_strided_slice %181 {offsets = [0, 96], sizes = [2, 32], strides = [1, 1]} : vector<2x128xf32> to vector<2x32xf32>
    %189 = math.tanh %188 : vector<2x32xf32>
    %190 = vector.extract_strided_slice %187 {offsets = [0, 0], sizes = [2, 32], strides = [1, 1]} : vector<2x96xf32> to vector<2x32xf32>
    %191 = vector.extract_strided_slice %187 {offsets = [0, 32], sizes = [2, 32], strides = [1, 1]} : vector<2x96xf32> to vector<2x32xf32>
    %192 = vector.extract_strided_slice %187 {offsets = [0, 64], sizes = [2, 32], strides = [1, 1]} : vector<2x96xf32> to vector<2x32xf32>
    %193 = arith.mulf %191, %154 : vector<2x32xf32>
    %194 = arith.mulf %190, %189 : vector<2x32xf32>
    %195 = arith.addf %193, %194 : vector<2x32xf32>
    %196 = math.tanh %195 : vector<2x32xf32>
    %197 = arith.mulf %192, %196 : vector<2x32xf32>
    %cst_55 = arith.constant dense<0.000000e+00> : vector<2x128xf32>
    %198 = tpu.matmul %197, %9, %cst_55 {dimension_numbers = #tpu.dot_dimension_numbers<[1], [0], [0], [1], [0, 0, 1, 1], [], []>} : vector<2x32xf32>, vector<32x128xf32>, vector<2x128xf32> -> vector<2x128xf32>
    %199 = vector.broadcast %10 : vector<1x128xf32> to vector<2x128xf32>
    %200 = arith.addf %199, %198 : vector<2x128xf32>
    %cst_56 = arith.constant dense<0.000000e+00> : vector<2x128xf32>
    %201 = tpu.matmul %177, %8, %cst_56 {dimension_numbers = #tpu.dot_dimension_numbers<[1], [0], [0], [1], [0, 0, 1, 1], [], []>} : vector<2x32xf32>, vector<32x128xf32>, vector<2x128xf32> -> vector<2x128xf32>
    %202 = arith.addf %200, %201 : vector<2x128xf32>
    %203 = vector.extract_strided_slice %202 {offsets = [0, 0], sizes = [2, 96], strides = [1, 1]} : vector<2x128xf32> to vector<2x96xf32>
    %204 = arith.negf %203 : vector<2x96xf32>
    %205 = math.exp %204 : vector<2x96xf32>
    %cst_57 = arith.constant 1.000000e+00 : f32
    %206 = vector.broadcast %cst_57 : f32 to vector<2x96xf32>
    %207 = arith.addf %206, %205 : vector<2x96xf32>
    %208 = arith.divf %206, %207 : vector<2x96xf32>
    %209 = vector.extract_strided_slice %202 {offsets = [0, 96], sizes = [2, 32], strides = [1, 1]} : vector<2x128xf32> to vector<2x32xf32>
    %210 = math.tanh %209 : vector<2x32xf32>
    %211 = vector.extract_strided_slice %208 {offsets = [0, 0], sizes = [2, 32], strides = [1, 1]} : vector<2x96xf32> to vector<2x32xf32>
    %212 = vector.extract_strided_slice %208 {offsets = [0, 32], sizes = [2, 32], strides = [1, 1]} : vector<2x96xf32> to vector<2x32xf32>
    %213 = vector.extract_strided_slice %208 {offsets = [0, 64], sizes = [2, 32], strides = [1, 1]} : vector<2x96xf32> to vector<2x32xf32>
    %214 = arith.mulf %212, %175 : vector<2x32xf32>
    %215 = arith.mulf %211, %210 : vector<2x32xf32>
    %216 = arith.addf %214, %215 : vector<2x32xf32>
    %217 = math.tanh %216 : vector<2x32xf32>
    %218 = arith.mulf %213, %217 : vector<2x32xf32>
    %c8_58 = arith.constant 8 : index
    %c0_59 = arith.constant 0 : index
    %219 = vector.load %arg11[%c8_58, %c0_59] : memref<16x32xf32, #tpu.memory_space<vmem>>, vector<2x32xf32>
    tpu.vector_store %arg11[%c8_58, %c0_59], %218 {strides = array<i32>} : memref<16x32xf32, #tpu.memory_space<vmem>>, vector<2x32xf32>,
    %c10 = arith.constant 10 : index
    %c0_60 = arith.constant 0 : index
    %220 = vector.load %arg10[%c10, %c0_60] : memref<16x128xf32, #tpu.memory_space<vmem>>, vector<2x128xf32>
    %cst_61 = arith.constant dense<0.000000e+00> : vector<2x128xf32>
    %221 = tpu.matmul %197, %7, %cst_61 {dimension_numbers = #tpu.dot_dimension_numbers<[1], [0], [0], [1], [0, 0, 1, 1], [], []>} : vector<2x32xf32>, vector<32x128xf32>, vector<2x128xf32> -> vector<2x128xf32>
    %222 = arith.addf %220, %221 : vector<2x128xf32>
    %223 = vector.extract_strided_slice %222 {offsets = [0, 0], sizes = [2, 96], strides = [1, 1]} : vector<2x128xf32> to vector<2x96xf32>
    %224 = arith.negf %223 : vector<2x96xf32>
    %225 = math.exp %224 : vector<2x96xf32>
    %cst_62 = arith.constant 1.000000e+00 : f32
    %226 = vector.broadcast %cst_62 : f32 to vector<2x96xf32>
    %227 = arith.addf %226, %225 : vector<2x96xf32>
    %228 = arith.divf %226, %227 : vector<2x96xf32>
    %229 = vector.extract_strided_slice %222 {offsets = [0, 96], sizes = [2, 32], strides = [1, 1]} : vector<2x128xf32> to vector<2x32xf32>
    %230 = math.tanh %229 : vector<2x32xf32>
    %231 = vector.extract_strided_slice %228 {offsets = [0, 0], sizes = [2, 32], strides = [1, 1]} : vector<2x96xf32> to vector<2x32xf32>
    %232 = vector.extract_strided_slice %228 {offsets = [0, 32], sizes = [2, 32], strides = [1, 1]} : vector<2x96xf32> to vector<2x32xf32>
    %233 = vector.extract_strided_slice %228 {offsets = [0, 64], sizes = [2, 32], strides = [1, 1]} : vector<2x96xf32> to vector<2x32xf32>
    %234 = arith.mulf %232, %195 : vector<2x32xf32>
    %235 = arith.mulf %231, %230 : vector<2x32xf32>
    %236 = arith.addf %234, %235 : vector<2x32xf32>
    %237 = math.tanh %236 : vector<2x32xf32>
    %238 = arith.mulf %233, %237 : vector<2x32xf32>
    %cst_63 = arith.constant dense<0.000000e+00> : vector<2x128xf32>
    %239 = tpu.matmul %238, %9, %cst_63 {dimension_numbers = #tpu.dot_dimension_numbers<[1], [0], [0], [1], [0, 0, 1, 1], [], []>} : vector<2x32xf32>, vector<32x128xf32>, vector<2x128xf32> -> vector<2x128xf32>
    %240 = vector.broadcast %10 : vector<1x128xf32> to vector<2x128xf32>
    %241 = arith.addf %240, %239 : vector<2x128xf32>
    %cst_64 = arith.constant dense<0.000000e+00> : vector<2x128xf32>
    %242 = tpu.matmul %218, %8, %cst_64 {dimension_numbers = #tpu.dot_dimension_numbers<[1], [0], [0], [1], [0, 0, 1, 1], [], []>} : vector<2x32xf32>, vector<32x128xf32>, vector<2x128xf32> -> vector<2x128xf32>
    %243 = arith.addf %241, %242 : vector<2x128xf32>
    %244 = vector.extract_strided_slice %243 {offsets = [0, 0], sizes = [2, 96], strides = [1, 1]} : vector<2x128xf32> to vector<2x96xf32>
    %245 = arith.negf %244 : vector<2x96xf32>
    %246 = math.exp %245 : vector<2x96xf32>
    %cst_65 = arith.constant 1.000000e+00 : f32
    %247 = vector.broadcast %cst_65 : f32 to vector<2x96xf32>
    %248 = arith.addf %247, %246 : vector<2x96xf32>
    %249 = arith.divf %247, %248 : vector<2x96xf32>
    %250 = vector.extract_strided_slice %243 {offsets = [0, 96], sizes = [2, 32], strides = [1, 1]} : vector<2x128xf32> to vector<2x32xf32>
    %251 = math.tanh %250 : vector<2x32xf32>
    %252 = vector.extract_strided_slice %249 {offsets = [0, 0], sizes = [2, 32], strides = [1, 1]} : vector<2x96xf32> to vector<2x32xf32>
    %253 = vector.extract_strided_slice %249 {offsets = [0, 32], sizes = [2, 32], strides = [1, 1]} : vector<2x96xf32> to vector<2x32xf32>
    %254 = vector.extract_strided_slice %249 {offsets = [0, 64], sizes = [2, 32], strides = [1, 1]} : vector<2x96xf32> to vector<2x32xf32>
    %255 = arith.mulf %253, %216 : vector<2x32xf32>
    %256 = arith.mulf %252, %251 : vector<2x32xf32>
    %257 = arith.addf %255, %256 : vector<2x32xf32>
    %258 = math.tanh %257 : vector<2x32xf32>
    %259 = arith.mulf %254, %258 : vector<2x32xf32>
    %c10_66 = arith.constant 10 : index
    %c0_67 = arith.constant 0 : index
    %260 = vector.load %arg11[%c10_66, %c0_67] : memref<16x32xf32, #tpu.memory_space<vmem>>, vector<2x32xf32>
    tpu.vector_store %arg11[%c10_66, %c0_67], %259 {strides = array<i32>} : memref<16x32xf32, #tpu.memory_space<vmem>>, vector<2x32xf32>,
    %c12 = arith.constant 12 : index
    %c0_68 = arith.constant 0 : index
    %261 = vector.load %arg10[%c12, %c0_68] : memref<16x128xf32, #tpu.memory_space<vmem>>, vector<2x128xf32>
    %cst_69 = arith.constant dense<0.000000e+00> : vector<2x128xf32>
    %262 = tpu.matmul %238, %7, %cst_69 {dimension_numbers = #tpu.dot_dimension_numbers<[1], [0], [0], [1], [0, 0, 1, 1], [], []>} : vector<2x32xf32>, vector<32x128xf32>, vector<2x128xf32> -> vector<2x128xf32>
    %263 = arith.addf %261, %262 : vector<2x128xf32>
    %264 = vector.extract_strided_slice %263 {offsets = [0, 0], sizes = [2, 96], strides = [1, 1]} : vector<2x128xf32> to vector<2x96xf32>
    %265 = arith.negf %264 : vector<2x96xf32>
    %266 = math.exp %265 : vector<2x96xf32>
    %cst_70 = arith.constant 1.000000e+00 : f32
    %267 = vector.broadcast %cst_70 : f32 to vector<2x96xf32>
    %268 = arith.addf %267, %266 : vector<2x96xf32>
    %269 = arith.divf %267, %268 : vector<2x96xf32>
    %270 = vector.extract_strided_slice %263 {offsets = [0, 96], sizes = [2, 32], strides = [1, 1]} : vector<2x128xf32> to vector<2x32xf32>
    %271 = math.tanh %270 : vector<2x32xf32>
    %272 = vector.extract_strided_slice %269 {offsets = [0, 0], sizes = [2, 32], strides = [1, 1]} : vector<2x96xf32> to vector<2x32xf32>
    %273 = vector.extract_strided_slice %269 {offsets = [0, 32], sizes = [2, 32], strides = [1, 1]} : vector<2x96xf32> to vector<2x32xf32>
    %274 = vector.extract_strided_slice %269 {offsets = [0, 64], sizes = [2, 32], strides = [1, 1]} : vector<2x96xf32> to vector<2x32xf32>
    %275 = arith.mulf %273, %236 : vector<2x32xf32>
    %276 = arith.mulf %272, %271 : vector<2x32xf32>
    %277 = arith.addf %275, %276 : vector<2x32xf32>
    %278 = math.tanh %277 : vector<2x32xf32>
    %279 = arith.mulf %274, %278 : vector<2x32xf32>
    %cst_71 = arith.constant dense<0.000000e+00> : vector<2x128xf32>
    %280 = tpu.matmul %279, %9, %cst_71 {dimension_numbers = #tpu.dot_dimension_numbers<[1], [0], [0], [1], [0, 0, 1, 1], [], []>} : vector<2x32xf32>, vector<32x128xf32>, vector<2x128xf32> -> vector<2x128xf32>
    %281 = vector.broadcast %10 : vector<1x128xf32> to vector<2x128xf32>
    %282 = arith.addf %281, %280 : vector<2x128xf32>
    %cst_72 = arith.constant dense<0.000000e+00> : vector<2x128xf32>
    %283 = tpu.matmul %259, %8, %cst_72 {dimension_numbers = #tpu.dot_dimension_numbers<[1], [0], [0], [1], [0, 0, 1, 1], [], []>} : vector<2x32xf32>, vector<32x128xf32>, vector<2x128xf32> -> vector<2x128xf32>
    %284 = arith.addf %282, %283 : vector<2x128xf32>
    %285 = vector.extract_strided_slice %284 {offsets = [0, 0], sizes = [2, 96], strides = [1, 1]} : vector<2x128xf32> to vector<2x96xf32>
    %286 = arith.negf %285 : vector<2x96xf32>
    %287 = math.exp %286 : vector<2x96xf32>
    %cst_73 = arith.constant 1.000000e+00 : f32
    %288 = vector.broadcast %cst_73 : f32 to vector<2x96xf32>
    %289 = arith.addf %288, %287 : vector<2x96xf32>
    %290 = arith.divf %288, %289 : vector<2x96xf32>
    %291 = vector.extract_strided_slice %284 {offsets = [0, 96], sizes = [2, 32], strides = [1, 1]} : vector<2x128xf32> to vector<2x32xf32>
    %292 = math.tanh %291 : vector<2x32xf32>
    %293 = vector.extract_strided_slice %290 {offsets = [0, 0], sizes = [2, 32], strides = [1, 1]} : vector<2x96xf32> to vector<2x32xf32>
    %294 = vector.extract_strided_slice %290 {offsets = [0, 32], sizes = [2, 32], strides = [1, 1]} : vector<2x96xf32> to vector<2x32xf32>
    %295 = vector.extract_strided_slice %290 {offsets = [0, 64], sizes = [2, 32], strides = [1, 1]} : vector<2x96xf32> to vector<2x32xf32>
    %296 = arith.mulf %294, %257 : vector<2x32xf32>
    %297 = arith.mulf %293, %292 : vector<2x32xf32>
    %298 = arith.addf %296, %297 : vector<2x32xf32>
    %299 = math.tanh %298 : vector<2x32xf32>
    %300 = arith.mulf %295, %299 : vector<2x32xf32>
    %c12_74 = arith.constant 12 : index
    %c0_75 = arith.constant 0 : index
    %301 = vector.load %arg11[%c12_74, %c0_75] : memref<16x32xf32, #tpu.memory_space<vmem>>, vector<2x32xf32>
    tpu.vector_store %arg11[%c12_74, %c0_75], %300 {strides = array<i32>} : memref<16x32xf32, #tpu.memory_space<vmem>>, vector<2x32xf32>,
    %c14 = arith.constant 14 : index
    %c0_76 = arith.constant 0 : index
    %302 = vector.load %arg10[%c14, %c0_76] : memref<16x128xf32, #tpu.memory_space<vmem>>, vector<2x128xf32>
    %cst_77 = arith.constant dense<0.000000e+00> : vector<2x128xf32>
    %303 = tpu.matmul %279, %7, %cst_77 {dimension_numbers = #tpu.dot_dimension_numbers<[1], [0], [0], [1], [0, 0, 1, 1], [], []>} : vector<2x32xf32>, vector<32x128xf32>, vector<2x128xf32> -> vector<2x128xf32>
    %304 = arith.addf %302, %303 : vector<2x128xf32>
    %305 = vector.extract_strided_slice %304 {offsets = [0, 0], sizes = [2, 96], strides = [1, 1]} : vector<2x128xf32> to vector<2x96xf32>
    %306 = arith.negf %305 : vector<2x96xf32>
    %307 = math.exp %306 : vector<2x96xf32>
    %cst_78 = arith.constant 1.000000e+00 : f32
    %308 = vector.broadcast %cst_78 : f32 to vector<2x96xf32>
    %309 = arith.addf %308, %307 : vector<2x96xf32>
    %310 = arith.divf %308, %309 : vector<2x96xf32>
    %311 = vector.extract_strided_slice %304 {offsets = [0, 96], sizes = [2, 32], strides = [1, 1]} : vector<2x128xf32> to vector<2x32xf32>
    %312 = math.tanh %311 : vector<2x32xf32>
    %313 = vector.extract_strided_slice %310 {offsets = [0, 0], sizes = [2, 32], strides = [1, 1]} : vector<2x96xf32> to vector<2x32xf32>
    %314 = vector.extract_strided_slice %310 {offsets = [0, 32], sizes = [2, 32], strides = [1, 1]} : vector<2x96xf32> to vector<2x32xf32>
    %315 = vector.extract_strided_slice %310 {offsets = [0, 64], sizes = [2, 32], strides = [1, 1]} : vector<2x96xf32> to vector<2x32xf32>
    %316 = arith.mulf %314, %277 : vector<2x32xf32>
    %317 = arith.mulf %313, %312 : vector<2x32xf32>
    %318 = arith.addf %316, %317 : vector<2x32xf32>
    %319 = math.tanh %318 : vector<2x32xf32>
    %320 = arith.mulf %315, %319 : vector<2x32xf32>
    %cst_79 = arith.constant dense<0.000000e+00> : vector<2x128xf32>
    %321 = tpu.matmul %320, %9, %cst_79 {dimension_numbers = #tpu.dot_dimension_numbers<[1], [0], [0], [1], [0, 0, 1, 1], [], []>} : vector<2x32xf32>, vector<32x128xf32>, vector<2x128xf32> -> vector<2x128xf32>
    %322 = vector.broadcast %10 : vector<1x128xf32> to vector<2x128xf32>
    %323 = arith.addf %322, %321 : vector<2x128xf32>
    %cst_80 = arith.constant dense<0.000000e+00> : vector<2x128xf32>
    %324 = tpu.matmul %300, %8, %cst_80 {dimension_numbers = #tpu.dot_dimension_numbers<[1], [0], [0], [1], [0, 0, 1, 1], [], []>} : vector<2x32xf32>, vector<32x128xf32>, vector<2x128xf32> -> vector<2x128xf32>
    %325 = arith.addf %323, %324 : vector<2x128xf32>
    %326 = vector.extract_strided_slice %325 {offsets = [0, 0], sizes = [2, 96], strides = [1, 1]} : vector<2x128xf32> to vector<2x96xf32>
    %327 = arith.negf %326 : vector<2x96xf32>
    %328 = math.exp %327 : vector<2x96xf32>
    %cst_81 = arith.constant 1.000000e+00 : f32
    %329 = vector.broadcast %cst_81 : f32 to vector<2x96xf32>
    %330 = arith.addf %329, %328 : vector<2x96xf32>
    %331 = arith.divf %329, %330 : vector<2x96xf32>
    %332 = vector.extract_strided_slice %325 {offsets = [0, 96], sizes = [2, 32], strides = [1, 1]} : vector<2x128xf32> to vector<2x32xf32>
    %333 = math.tanh %332 : vector<2x32xf32>
    %334 = vector.extract_strided_slice %331 {offsets = [0, 0], sizes = [2, 32], strides = [1, 1]} : vector<2x96xf32> to vector<2x32xf32>
    %335 = vector.extract_strided_slice %331 {offsets = [0, 32], sizes = [2, 32], strides = [1, 1]} : vector<2x96xf32> to vector<2x32xf32>
    %336 = vector.extract_strided_slice %331 {offsets = [0, 64], sizes = [2, 32], strides = [1, 1]} : vector<2x96xf32> to vector<2x32xf32>
    %337 = arith.mulf %335, %298 : vector<2x32xf32>
    %338 = arith.mulf %334, %333 : vector<2x32xf32>
    %339 = arith.addf %337, %338 : vector<2x32xf32>
    %340 = math.tanh %339 : vector<2x32xf32>
    %341 = arith.mulf %336, %340 : vector<2x32xf32>
    %c14_82 = arith.constant 14 : index
    %c0_83 = arith.constant 0 : index
    %342 = vector.load %arg11[%c14_82, %c0_83] : memref<16x32xf32, #tpu.memory_space<vmem>>, vector<2x32xf32>
    tpu.vector_store %arg11[%c14_82, %c0_83], %341 {strides = array<i32>} : memref<16x32xf32, #tpu.memory_space<vmem>>, vector<2x32xf32>,
    %c0_84 = arith.constant 0 : index
    %c0_85 = arith.constant 0 : index
    %343 = vector.load %arg11[%c0_84, %c0_85] : memref<16x32xf32, #tpu.memory_space<vmem>>, vector<16x32xf32>
    %cst_86 = arith.constant 0.000000e+00 : f32
    %344 = vector.broadcast %cst_86 : f32 to vector<16x32xf32>
    %345 = arith.maximumf %343, %344 : vector<16x32xf32>
    %c0_87 = arith.constant 0 : index
    %c0_88 = arith.constant 0 : index
    %346 = vector.load %arg7[%c0_87, %c0_88] : memref<32x128xf32, #tpu.memory_space<vmem>>, vector<32x128xf32>
    %cst_89 = arith.constant dense<0.000000e+00> : vector<16x128xf32>
    %347 = tpu.matmul %345, %346, %cst_89 {dimension_numbers = #tpu.dot_dimension_numbers<[1], [0], [0], [1], [0, 0, 1, 1], [], []>} : vector<16x32xf32>, vector<32x128xf32>, vector<16x128xf32> -> vector<16x128xf32>
    %c0_90 = arith.constant 0 : index
    %c0_91 = arith.constant 0 : index
    %348 = vector.load %arg8[%c0_90, %c0_91] : memref<1x128xf32, #tpu.memory_space<vmem>>, vector<1x128xf32>
    %349 = vector.broadcast %348 : vector<1x128xf32> to vector<16x128xf32>
    %350 = arith.addf %347, %349 : vector<16x128xf32>
    %c0_92 = arith.constant 0 : index
    %c0_93 = arith.constant 0 : index
    %351 = vector.load %arg9[%c0_92, %c0_93] : memref<16x128xf32, #tpu.memory_space<vmem>>, vector<16x128xf32>
    tpu.vector_store %arg9[%c0_92, %c0_93], %350 {strides = array<i32>} : memref<16x128xf32, #tpu.memory_space<vmem>>, vector<16x128xf32>,
    return
  }
}

</mosaic_0001>

<llo_original>
// kernel: lstm_model_forward.1
$region0: #{lstm_model_forward.1}
  #allocation0 [shape = 'u32[]', space=smem, size = 0x4, offset = 0x4, fixed_abs, tag = 'smem constant byte address 0x4 - core index']
  #allocation1 [shape = 'u32[72,128]{1,0:T(1,128)}', space=vmem, size = 0x9000, scoped, tag = 'internal scratch']
  #allocation2 [shape = 'f32[16,128]{1,0:T(8,128)}', space=vmem, size = 0x2000, scoped, tag = 'scratch operand']
  #allocation3 [shape = 'f32[16,32]{1,0:T(8,128)}', space=vmem, size = 0x2000, scoped, tag = 'scratch operand']
  %s0 = inlined_call_operand.vmem [shape: f32[16,16], index: 0, kind: input, shape index: {}]
  %s1 = inlined_call_operand.hbm [shape: f32[16,128], index: 1, kind: input, shape index: {}]
  %s2 = inlined_call_operand.vmem [shape: f32[32,128], index: 2, kind: input, shape index: {}]
  %s3 = inlined_call_operand.vmem [shape: f32[1,128], index: 3, kind: input, shape index: {}]
  %s4 = inlined_call_operand.hbm [shape: f32[32,128], index: 4, kind: input, shape index: {}]
  %s5 = inlined_call_operand.hbm [shape: f32[32,128], index: 5, kind: input, shape index: {}]
  %s6 = inlined_call_operand.vmem [shape: f32[1,128], index: 6, kind: input, shape index: {}]
  %s7 = inlined_call_operand.hbm [shape: f32[32,128], index: 7, kind: input, shape index: {}]
  %s8 = inlined_call_operand.vmem [shape: f32[1,128], index: 8, kind: input, shape index: {}]
  %s9 = inlined_call_operand.vmem [shape: f32[16,128], index: 9, kind: output, shape index: {}]
  %s10 = sld [smem:[#allocation0]]
  $region62: #{lstm_model_forward.1} parent=0
    _
  %s12 = ssub.s32 1, %s10
  %s13 = scalar_select 0, %s12, %s10
  $region1: #{lstm_model_forward.1} parent=0
    #allocation4 [shape = 'u8[8192]{0}', space=vmem, size = 0x2000, scoped, tag = 'input window, operand 1, single buffered']
    #allocation5 [shape = 's32[1]{0}', space=sflag, size = 0x4, scoped, tag = 'scoped memory for lstm_model_forward.1']
    #allocation6 [shape = 'u8[16384]{0}', space=vmem, size = 0x4000, scoped, tag = 'input window, operand 4, single buffered']
    #allocation7 [shape = 's32[1]{0}', space=sflag, size = 0x4, scoped, tag = 'scoped memory for lstm_model_forward.1']
    #allocation8 [shape = 'u8[16384]{0}', space=vmem, size = 0x4000, scoped, tag = 'input window, operand 5, single buffered']
    #allocation9 [shape = 'u8[16384]{0}', space=vmem, size = 0x4000, scoped, tag = 'input window, operand 7, single buffered']
    #allocation10 [shape = 's32[1]{0}', space=sflag, size = 0x4, scoped, tag = 'scoped memory for lstm_model_forward.1']
    %14 = vsyncpa [#allocation5], 0
    %15 = vsyncpa [#allocation7], 0
    %16 = vsyncpa [#allocation10], 0
    // Predicated region
    $region2: #{lstm_model_forward.1} parent=1 // pred_check
      _
    $region3: #{lstm_model_forward.1} parent=1 // pred_check_branch
      %18 = sbr.rel (0) target = $region5
    $region4: #{lstm_model_forward.1} parent=1 // pred_region
      _
    $region5: #{lstm_model_forward.1} parent=1 // pred_fallthru
      _
    // Predicated region
    $region6: #{lstm_model_forward.1} parent=1 // pred_check
      _
    $region7: #{lstm_model_forward.1} parent=1 // pred_check_branch
      %20 = sbr.rel (0) target = $region9
    $region8: #{lstm_model_forward.1} parent=1 // pred_region
      %22 = vsyncadd [#allocation5], 0
      %s23 = sshll.u32 %s1, 4
      %s24 = int_to_ptr.hbm [resolvable:$true] %s23
      %s25 = sshll.u32 [#allocation4], 4
      %s26 = int_to_ptr.vmem [resolvable:$true] %s25
      %31 = dma.hbm_to_vmem [thread:$0]  %s24, 256, %s26, [#allocation5], 128, 128, 8
    $region9: #{lstm_model_forward.1} parent=1 // pred_fallthru
      _
    // Predicated region
    $region10: #{lstm_model_forward.1} parent=1 // pred_check
      _
    $region11: #{lstm_model_forward.1} parent=1 // pred_check_branch
      %33 = sbr.rel (0) target = $region13
    $region12: #{lstm_model_forward.1} parent=1 // pred_region
      _
    $region13: #{lstm_model_forward.1} parent=1 // pred_fallthru
      _
    // Predicated region
    $region14: #{lstm_model_forward.1} parent=1 // pred_check
      _
    $region15: #{lstm_model_forward.1} parent=1 // pred_check_branch
      %35 = sbr.rel (0) target = $region17
    $region16: #{lstm_model_forward.1} parent=1 // pred_region
      _
    $region17: #{lstm_model_forward.1} parent=1 // pred_fallthru
      _
    // Predicated region
    $region18: #{lstm_model_forward.1} parent=1 // pred_check
      _
    $region19: #{lstm_model_forward.1} parent=1 // pred_check_branch
      %37 = sbr.rel (0) target = $region21
    $region20: #{lstm_model_forward.1} parent=1 // pred_region
      %39 = vsyncadd [#allocation7], 0
      %s40 = sshll.u32 %s4, 4
      %s41 = int_to_ptr.hbm [resolvable:$true] %s40
      %s42 = sshll.u32 [#allocation6], 4
      %s43 = int_to_ptr.vmem [resolvable:$true] %s42
      %48 = dma.hbm_to_vmem [thread:$0]  %s41, 512, %s43, [#allocation7], 128, 128, 8
    $region21: #{lstm_model_forward.1} parent=1 // pred_fallthru
      _
    // Predicated region
    $region22: #{lstm_model_forward.1} parent=1 // pred_check
      _
    $region23: #{lstm_model_forward.1} parent=1 // pred_check_branch
      %50 = sbr.rel (0) target = $region25
    $region24: #{lstm_model_forward.1} parent=1 // pred_region
      %52 = vsyncadd [#allocation7], 0
      %s53 = sshll.u32 %s5, 4
      %s54 = int_to_ptr.hbm [resolvable:$true] %s53
      %s55 = sshll.u32 [#allocation8], 4
      %s56 = int_to_ptr.vmem [resolvable:$true] %s55
      %61 = dma.hbm_to_vmem [thread:$0]  %s54, 512, %s56, [#allocation7], 128, 128, 8
    $region25: #{lstm_model_forward.1} parent=1 // pred_fallthru
      _
    // Predicated region
    $region26: #{lstm_model_forward.1} parent=1 // pred_check
      _
    $region27: #{lstm_model_forward.1} parent=1 // pred_check_branch
      %63 = sbr.rel (0) target = $region29
    $region28: #{lstm_model_forward.1} parent=1 // pred_region
      _
    $region29: #{lstm_model_forward.1} parent=1 // pred_fallthru
      _
    // Predicated region
    $region30: #{lstm_model_forward.1} parent=1 // pred_check
      _
    $region31: #{lstm_model_forward.1} parent=1 // pred_check_branch
      %65 = sbr.rel (0) target = $region33
    $region32: #{lstm_model_forward.1} parent=1 // pred_region
      %67 = vsyncadd [#allocation10], 0
      %s68 = sshll.u32 %s7, 4
      %s69 = int_to_ptr.hbm [resolvable:$true] %s68
      %s70 = sshll.u32 [#allocation9], 4
      %s71 = int_to_ptr.vmem [resolvable:$true] %s70
      %76 = dma.hbm_to_vmem [thread:$0]  %s69, 512, %s71, [#allocation10], 128, 128, 8
    $region33: #{lstm_model_forward.1} parent=1 // pred_fallthru
      _
    // Predicated region
    $region34: #{lstm_model_forward.1} parent=1 // pred_check
      _
    $region35: #{lstm_model_forward.1} parent=1 // pred_check_branch
      %78 = sbr.rel (0) target = $region37
    $region36: #{lstm_model_forward.1} parent=1 // pred_region
      _
    $region37: #{lstm_model_forward.1} parent=1 // pred_fallthru
      _
    // Predicated region
    $region38: #{lstm_model_forward.1} parent=1 // pred_check
      _
    $region39: #{lstm_model_forward.1} parent=1 // pred_check_branch
      %80 = sbr.rel (0) target = $region41
    $region40: #{lstm_model_forward.1} parent=1 // pred_region
      %82 = dma.done [#allocation5], 256
    $region41: #{lstm_model_forward.1} parent=1 // pred_fallthru
      _
    // Predicated region
    $region42: #{lstm_model_forward.1} parent=1 // pred_check
      _
    $region43: #{lstm_model_forward.1} parent=1 // pred_check_branch
      %84 = sbr.rel (0) target = $region45
    $region44: #{lstm_model_forward.1} parent=1 // pred_region
      %86 = dma.done [#allocation7], 512
    $region45: #{lstm_model_forward.1} parent=1 // pred_fallthru
      _
    // Predicated region
    $region46: #{lstm_model_forward.1} parent=1 // pred_check
      _
    $region47: #{lstm_model_forward.1} parent=1 // pred_check_branch
      %88 = sbr.rel (0) target = $region49
    $region48: #{lstm_model_forward.1} parent=1 // pred_region
      %90 = dma.done [#allocation7], 512
    $region49: #{lstm_model_forward.1} parent=1 // pred_fallthru
      _
    // Predicated region
    $region50: #{lstm_model_forward.1} parent=1 // pred_check
      _
    $region51: #{lstm_model_forward.1} parent=1 // pred_check_branch
      %92 = sbr.rel (0) target = $region53
    $region52: #{lstm_model_forward.1} parent=1 // pred_region
      %94 = dma.done [#allocation10], 512
    $region53: #{lstm_model_forward.1} parent=1 // pred_fallthru
      _
    %v95 = vld [vmem:[%s0] sm:$0xff]
    %v96 = vld [vmem:[%s0 + $0x8] sm:$0xff]
    %v97 = vld [vmem:[#allocation4] sm:$0xff]
    %v98 = vld [vmem:[#allocation4 + $0x8] sm:$0xff]
    %v99 = vld [vmem:[%s3] sm:$0x1]
    %v101 = vperm.slane %v99, 0
    %vm103 = vcmask 130048
    %v105 = vsel %vm103, %v95, 0
    %v108 = vsel %vm103, %v96, 0
    %110 = vmatpush.msra.mxu0 0.0
    %111 = vmatpush.msra.mxu0 0.0
    %112 = vmatpush.msra.mxu0 0.0
    %113 = vmatpush.msra.mxu0 0.0
    %114 = vmatpush.msra.mxu0 0.0
    %115 = vmatpush.msra.mxu0 0.0
    %116 = vmatpush.msra.mxu0 0.0
    %117 = vmatpush.msra.mxu0 0.0
    %118 = vmatpush.msra.mxu0 0.0
    %119 = vmatpush.msra.mxu0 0.0
    %120 = vmatpush.msra.mxu0 0.0
    %121 = vmatpush.msra.mxu0 0.0
    %122 = vmatpush.msra.mxu0 0.0
    %123 = vmatpush.msra.mxu0 0.0
    %124 = vmatpush.msra.mxu0 %v98
    %125 = vmatpush.msra.mxu0 %v97
    %126 = vmatmul.f32.gmra.mxu0 %v105
    %v127 = vpop.f32.mrf.mxu0
    %v128 = vadd.f32 %v101, %v127
    %129 = vmatmul.f32.gmra.mxu0 %v108
    %v130 = vpop.f32.mrf.mxu0
    %v131 = vadd.f32 %v101, %v130
    %132 = vdwg.mxu0
    %133 = vst [vmem:[#allocation2] sm:$0xff] %v128
    %134 = vst [vmem:[#allocation2 + $0x8] sm:$0xff] %v131
    %v135 = vld [vmem:[%s2] sm:$0xff]
    %v136 = vld [vmem:[%s2 + $0x8] sm:$0xff]
    %v137 = vld [vmem:[%s2 + $0x10] sm:$0xff]
    %v138 = vld [vmem:[%s2 + $0x18] sm:$0xff]
    %v139 = vld [vmem:[#allocation8] sm:$0xff]
    %v140 = vld [vmem:[#allocation8 + $0x8] sm:$0xff]
    %v141 = vld [vmem:[#allocation8 + $0x10] sm:$0xff]
    %v142 = vld [vmem:[#allocation8 + $0x18] sm:$0xff]
    %v143 = vld [vmem:[#allocation6] sm:$0xff]
    %v144 = vld [vmem:[#allocation6 + $0x8] sm:$0xff]
    %v145 = vld [vmem:[#allocation6 + $0x10] sm:$0xff]
    %v146 = vld [vmem:[#allocation6 + $0x18] sm:$0xff]
    %v147 = vld [vmem:[%s6] sm:$0x1]
    %v148 = vld [vmem:[#allocation2] sm:$0x3]
    %vm149 = vcmask 261120
    %v151 = vsel %vm149, 0.0, 0
    %153 = vmatpush.msra.mxu0 0.0
    %154 = vmatpush.msra.mxu0 0.0
    %155 = vmatpush.msra.mxu0 0.0
    %156 = vmatpush.msra.mxu0 0.0
    %157 = vmatpush.msra.mxu0 0.0
    %158 = vmatpush.msra.mxu0 0.0
    %159 = vmatpush.msra.mxu0 0.0
    %160 = vmatpush.msra.mxu0 0.0
    %161 = vmatpush.msra.mxu0 0.0
    %162 = vmatpush.msra.mxu0 0.0
    %163 = vmatpush.msra.mxu0 0.0
    %164 = vmatpush.msra.mxu0 0.0
    %165 = vmatpush.msra.mxu0 %v138
    %166 = vmatpush.msra.mxu0 %v137
    %167 = vmatpush.msra.mxu0 %v136
    %168 = vmatpush.msra.mxu0 %v135
    %169 = vmatmul.f32.gmra.mxu0 %v151
    %v170 = vpop.f32.mrf.mxu0
    %v171 = vadd.f32 0.0, %v170
    %172 = vdwg.mxu0
    %v173 = vadd.f32 %v148, %v171
    %v174 = vxor.u32 %v173, 2147483648
    %v175 = vmul.f32 %v174, 1.442695
    %v176 = vpow.pop %v175
    %v177 = vadd.f32 %v176, 1.0
    %v178 = vrcp.pop %v177
    %v179 = vmul.f32 %v177, %v178
    %v180 = vsub.f32 1.0, %v179
    %v181 = vmul.f32 %v178, %v180
    %v182 = vadd.f32 %v178, %v181
    %vm183 = vweird.f32 %v177
    %vm184 = vweird.f32 %v178
    %vm185 = vmor %vm183, %vm184
    %v186 = vsel %vm185, %v178, %v182
    %v187 = vand.u32 2147483647, %v177
    %vm188 = vcmp.eq.f32.partialorder %v187, 8.507059e+37
    %v189 = vand.u32 %v177, 2147483648
    %v190 = vor.u32 1.1754944e-38, %v189
    %v191 = vsel %vm188, %v190, %v186
    %v192 = vmul.f32 1.0, %v191
    %v193 = vtanh.pop %v173
    %v194 = vmul.f32 %v192, 0.0
    %196 = vrot.lane.b32.xlu0 %v193, 32
    %v197 = vpop.permute.xlu0 %196
    %v199 = vmul.f32 %v192, %v197
    %201 = vrot.lane.b32.xlu0 %v199, 32
    %v202 = vpop.permute.xlu0 %201
    %v204 = vadd.f32 %v194, %v202
    %v205 = vtanh.pop %v204
    %207 = vrot.lane.b32.xlu0 %v205, 32
    %v208 = vpop.permute.xlu0 %207
    %v210 = vmul.f32 %v192, %v208
    %212 = vrot.lane.b32.xlu0 %v210, 64
    %v213 = vpop.permute.xlu0 %212
    %v214 = vsel %vm149, %v213, 0
    %216 = vmatpush.msra.mxu0 0.0
    %217 = vmatpush.msra.mxu0 0.0
    %218 = vmatpush.msra.mxu0 0.0
    %219 = vmatpush.msra.mxu0 0.0
    %220 = vmatpush.msra.mxu0 0.0
    %221 = vmatpush.msra.mxu0 0.0
    %222 = vmatpush.msra.mxu0 0.0
    %223 = vmatpush.msra.mxu0 0.0
    %224 = vmatpush.msra.mxu0 0.0
    %225 = vmatpush.msra.mxu0 0.0
    %226 = vmatpush.msra.mxu0 0.0
    %227 = vmatpush.msra.mxu0 0.0
    %228 = vmatpush.msra.mxu0 %v146
    %229 = vmatpush.msra.mxu0 %v145
    %230 = vmatpush.msra.mxu0 %v144
    %231 = vmatpush.msra.mxu0 %v143
    %232 = vmatmul.f32.gmra.mxu0 %v214
    %v233 = vpop.f32.mrf.mxu0
    %v234 = vadd.f32 0.0, %v233
    %235 = vdwg.mxu0
    %v237 = vperm.slane %v147, 0
    %v239 = vadd.f32 %v237, %v234
    %240 = vmatpush.msra.mxu0 0.0
    %241 = vmatpush.msra.mxu0 0.0
    %242 = vmatpush.msra.mxu0 0.0
    %243 = vmatpush.msra.mxu0 0.0
    %244 = vmatpush.msra.mxu0 0.0
    %245 = vmatpush.msra.mxu0 0.0
    %246 = vmatpush.msra.mxu0 0.0
    %247 = vmatpush.msra.mxu0 0.0
    %248 = vmatpush.msra.mxu0 0.0
    %249 = vmatpush.msra.mxu0 0.0
    %250 = vmatpush.msra.mxu0 0.0
    %251 = vmatpush.msra.mxu0 0.0
    %252 = vmatpush.msra.mxu0 %v142
    %253 = vmatpush.msra.mxu0 %v141
    %254 = vmatpush.msra.mxu0 %v140
    %255 = vmatpush.msra.mxu0 %v139
    %256 = vmatmul.f32.gmra.mxu0 %v151
    %v257 = vpop.f32.mrf.mxu0
    %v258 = vadd.f32 0.0, %v257
    %259 = vdwg.mxu0
    %v260 = vadd.f32 %v239, %v258
    %v261 = vxor.u32 %v260, 2147483648
    %v262 = vmul.f32 %v261, 1.442695
    %v263 = vpow.pop %v262
    %v264 = vadd.f32 %v263, 1.0
    %v265 = vrcp.pop %v264
    %v266 = vmul.f32 %v264, %v265
    %v267 = vsub.f32 1.0, %v266
    %v268 = vmul.f32 %v265, %v267
    %v269 = vadd.f32 %v265, %v268
    %vm270 = vweird.f32 %v264
    %vm271 = vweird.f32 %v265
    %vm272 = vmor %vm270, %vm271
    %v273 = vsel %vm272, %v265, %v269
    %v274 = vand.u32 2147483647, %v264
    %vm275 = vcmp.eq.f32.partialorder %v274, 8.507059e+37
    %v276 = vand.u32 %v264, 2147483648
    %v277 = vor.u32 1.1754944e-38, %v276
    %v278 = vsel %vm275, %v277, %v273
    %v279 = vmul.f32 1.0, %v278
    %v280 = vtanh.pop %v260
    %v281 = vmul.f32 %v279, 0.0
    %283 = vrot.lane.b32.xlu0 %v280, 32
    %v284 = vpop.permute.xlu0 %283
    %v286 = vmul.f32 %v279, %v284
    %288 = vrot.lane.b32.xlu0 %v286, 32
    %v289 = vpop.permute.xlu0 %288
    %v291 = vadd.f32 %v281, %v289
    %v292 = vtanh.pop %v291
    %294 = vrot.lane.b32.xlu0 %v292, 32
    %v295 = vpop.permute.xlu0 %294
    %v297 = vmul.f32 %v279, %v295
    %299 = vrot.lane.b32.xlu0 %v297, 64
    %v300 = vpop.permute.xlu0 %299
    %vm302 = vcmask 254976
    %303 = vst.msk [vmem:[#allocation3] sm:$0x3] %vm302, %v300
    %v304 = vld [vmem:[#allocation2 + $0x2] sm:$0x3]
    %305 = vmatpush.msra.mxu0 0.0
    %306 = vmatpush.msra.mxu0 0.0
    %307 = vmatpush.msra.mxu0 0.0
    %308 = vmatpush.msra.mxu0 0.0
    %309 = vmatpush.msra.mxu0 0.0
    %310 = vmatpush.msra.mxu0 0.0
    %311 = vmatpush.msra.mxu0 0.0
    %312 = vmatpush.msra.mxu0 0.0
    %313 = vmatpush.msra.mxu0 0.0
    %314 = vmatpush.msra.mxu0 0.0
    %315 = vmatpush.msra.mxu0 0.0
    %316 = vmatpush.msra.mxu0 0.0
    %317 = vmatpush.msra.mxu0 %v138
    %318 = vmatpush.msra.mxu0 %v137
    %319 = vmatpush.msra.mxu0 %v136
    %320 = vmatpush.msra.mxu0 %v135
    %321 = vmatmul.f32.gmra.mxu0 %v214
    %v322 = vpop.f32.mrf.mxu0
    %v323 = vadd.f32 0.0, %v322
    %324 = vdwg.mxu0
    %v325 = vadd.f32 %v304, %v323
    %v326 = vxor.u32 %v325, 2147483648
    %v327 = vmul.f32 %v326, 1.442695
    %v328 = vpow.pop %v327
    %v329 = vadd.f32 %v328, 1.0
    %v330 = vrcp.pop %v329
    %v331 = vmul.f32 %v329, %v330
    %v332 = vsub.f32 1.0, %v331
    %v333 = vmul.f32 %v330, %v332
    %v334 = vadd.f32 %v330, %v333
    %vm335 = vweird.f32 %v329
    %vm336 = vweird.f32 %v330
    %vm337 = vmor %vm335, %vm336
    %v338 = vsel %vm337, %v330, %v334
    %v339 = vand.u32 2147483647, %v329
    %vm340 = vcmp.eq.f32.partialorder %v339, 8.507059e+37
    %v341 = vand.u32 %v329, 2147483648
    %v342 = vor.u32 1.1754944e-38, %v341
    %v343 = vsel %vm340, %v342, %v338
    %v344 = vmul.f32 1.0, %v343
    %v345 = vtanh.pop %v325
    %v346 = vmul.f32 %v344, %v204
    %348 = vrot.lane.b32.xlu0 %v345, 32
    %v349 = vpop.permute.xlu0 %348
    %v351 = vmul.f32 %v344, %v349
    %353 = vrot.lane.b32.xlu0 %v351, 32
    %v354 = vpop.permute.xlu0 %353
    %v356 = vadd.f32 %v346, %v354
    %v357 = vtanh.pop %v356
    %359 = vrot.lane.b32.xlu0 %v357, 32
    %v360 = vpop.permute.xlu0 %359
    %v362 = vmul.f32 %v344, %v360
    %364 = vrot.lane.b32.xlu0 %v362, 64
    %v365 = vpop.permute.xlu0 %364
    %v366 = vsel %vm149, %v365, 0
    %368 = vmatpush.msra.mxu0 0.0
    %369 = vmatpush.msra.mxu0 0.0
    %370 = vmatpush.msra.mxu0 0.0
    %371 = vmatpush.msra.mxu0 0.0
    %372 = vmatpush.msra.mxu0 0.0
    %373 = vmatpush.msra.mxu0 0.0
    %374 = vmatpush.msra.mxu0 0.0
    %375 = vmatpush.msra.mxu0 0.0
    %376 = vmatpush.msra.mxu0 0.0
    %377 = vmatpush.msra.mxu0 0.0
    %378 = vmatpush.msra.mxu0 0.0
    %379 = vmatpush.msra.mxu0 0.0
    %380 = vmatpush.msra.mxu0 %v146
    %381 = vmatpush.msra.mxu0 %v145
    %382 = vmatpush.msra.mxu0 %v144
    %383 = vmatpush.msra.mxu0 %v143
    %384 = vmatmul.f32.gmra.mxu0 %v366
    %v385 = vpop.f32.mrf.mxu0
    %v386 = vadd.f32 0.0, %v385
    %387 = vdwg.mxu0
    %v388 = vadd.f32 %v237, %v386
    %v389 = vsel %vm149, %v300, 0
    %391 = vmatpush.msra.mxu0 0.0
    %392 = vmatpush.msra.mxu0 0.0
    %393 = vmatpush.msra.mxu0 0.0
    %394 = vmatpush.msra.mxu0 0.0
    %395 = vmatpush.msra.mxu0 0.0
    %396 = vmatpush.msra.mxu0 0.0
    %397 = vmatpush.msra.mxu0 0.0
    %398 = vmatpush.msra.mxu0 0.0
    %399 = vmatpush.msra.mxu0 0.0
    %400 = vmatpush.msra.mxu0 0.0
    %401 = vmatpush.msra.mxu0 0.0
    %402 = vmatpush.msra.mxu0 0.0
    %403 = vmatpush.msra.mxu0 %v142
    %404 = vmatpush.msra.mxu0 %v141
    %405 = vmatpush.msra.mxu0 %v140
    %406 = vmatpush.msra.mxu0 %v139
    %407 = vmatmul.f32.gmra.mxu0 %v389
    %v408 = vpop.f32.mrf.mxu0
    %v409 = vadd.f32 0.0, %v408
    %410 = vdwg.mxu0
    %v411 = vadd.f32 %v388, %v409
    %v412 = vxor.u32 %v411, 2147483648
    %v413 = vmul.f32 %v412, 1.442695
    %v414 = vpow.pop %v413
    %v415 = vadd.f32 %v414, 1.0
    %v416 = vrcp.pop %v415
    %v417 = vmul.f32 %v415, %v416
    %v418 = vsub.f32 1.0, %v417
    %v419 = vmul.f32 %v416, %v418
    %v420 = vadd.f32 %v416, %v419
    %vm421 = vweird.f32 %v415
    %vm422 = vweird.f32 %v416
    %vm423 = vmor %vm421, %vm422
    %v424 = vsel %vm423, %v416, %v420
    %v425 = vand.u32 2147483647, %v415
    %vm426 = vcmp.eq.f32.partialorder %v425, 8.507059e+37
    %v427 = vand.u32 %v415, 2147483648
    %v428 = vor.u32 1.1754944e-38, %v427
    %v429 = vsel %vm426, %v428, %v424
    %v430 = vmul.f32 1.0, %v429
    %v431 = vtanh.pop %v411
    %v432 = vmul.f32 %v430, %v291
    %434 = vrot.lane.b32.xlu0 %v431, 32
    %v435 = vpop.permute.xlu0 %434
    %v437 = vmul.f32 %v430, %v435
    %439 = vrot.lane.b32.xlu0 %v437, 32
    %v440 = vpop.permute.xlu0 %439
    %v442 = vadd.f32 %v432, %v440
    %v443 = vtanh.pop %v442
    %445 = vrot.lane.b32.xlu0 %v443, 32
    %v446 = vpop.permute.xlu0 %445
    %v448 = vmul.f32 %v430, %v446
    %450 = vrot.lane.b32.xlu0 %v448, 64
    %v451 = vpop.permute.xlu0 %450
    %453 = vst.msk [vmem:[#allocation3 + $0x2] sm:$0x3] %vm302, %v451
    %v454 = vld [vmem:[#allocation2 + $0x4] sm:$0x3]
    %455 = vmatpush.msra.mxu0 0.0
    %456 = vmatpush.msra.mxu0 0.0
    %457 = vmatpush.msra.mxu0 0.0
    %458 = vmatpush.msra.mxu0 0.0
    %459 = vmatpush.msra.mxu0 0.0
    %460 = vmatpush.msra.mxu0 0.0
    %461 = vmatpush.msra.mxu0 0.0
    %462 = vmatpush.msra.mxu0 0.0
    %463 = vmatpush.msra.mxu0 0.0
    %464 = vmatpush.msra.mxu0 0.0
    %465 = vmatpush.msra.mxu0 0.0
    %466 = vmatpush.msra.mxu0 0.0
    %467 = vmatpush.msra.mxu0 %v138
    %468 = vmatpush.msra.mxu0 %v137
    %469 = vmatpush.msra.mxu0 %v136
    %470 = vmatpush.msra.mxu0 %v135
    %471 = vmatmul.f32.gmra.mxu0 %v366
    %v472 = vpop.f32.mrf.mxu0
    %v473 = vadd.f32 0.0, %v472
    %474 = vdwg.mxu0
    %v475 = vadd.f32 %v454, %v473
    %v476 = vxor.u32 %v475, 2147483648
    %v477 = vmul.f32 %v476, 1.442695
    %v478 = vpow.pop %v477
    %v479 = vadd.f32 %v478, 1.0
    %v480 = vrcp.pop %v479
    %v481 = vmul.f32 %v479, %v480
    %v482 = vsub.f32 1.0, %v481
    %v483 = vmul.f32 %v480, %v482
    %v484 = vadd.f32 %v480, %v483
    %vm485 = vweird.f32 %v479
    %vm486 = vweird.f32 %v480
    %vm487 = vmor %vm485, %vm486
    %v488 = vsel %vm487, %v480, %v484
    %v489 = vand.u32 2147483647, %v479
    %vm490 = vcmp.eq.f32.partialorder %v489, 8.507059e+37
    %v491 = vand.u32 %v479, 2147483648
    %v492 = vor.u32 1.1754944e-38, %v491
    %v493 = vsel %vm490, %v492, %v488
    %v494 = vmul.f32 1.0, %v493
    %v495 = vtanh.pop %v475
    %v496 = vmul.f32 %v494, %v356
    %498 = vrot.lane.b32.xlu0 %v495, 32
    %v499 = vpop.permute.xlu0 %498
    %v501 = vmul.f32 %v494, %v499
    %503 = vrot.lane.b32.xlu0 %v501, 32
    %v504 = vpop.permute.xlu0 %503
    %v506 = vadd.f32 %v496, %v504
    %v507 = vtanh.pop %v506
    %509 = vrot.lane.b32.xlu0 %v507, 32
    %v510 = vpop.permute.xlu0 %509
    %v512 = vmul.f32 %v494, %v510
    %514 = vrot.lane.b32.xlu0 %v512, 64
    %v515 = vpop.permute.xlu0 %514
    %v516 = vsel %vm149, %v515, 0
    %518 = vmatpush.msra.mxu0 0.0
    %519 = vmatpush.msra.mxu0 0.0
    %520 = vmatpush.msra.mxu0 0.0
    %521 = vmatpush.msra.mxu0 0.0
    %522 = vmatpush.msra.mxu0 0.0
    %523 = vmatpush.msra.mxu0 0.0
    %524 = vmatpush.msra.mxu0 0.0
    %525 = vmatpush.msra.mxu0 0.0
    %526 = vmatpush.msra.mxu0 0.0
    %527 = vmatpush.msra.mxu0 0.0
    %528 = vmatpush.msra.mxu0 0.0
    %529 = vmatpush.msra.mxu0 0.0
    %530 = vmatpush.msra.mxu0 %v146
    %531 = vmatpush.msra.mxu0 %v145
    %532 = vmatpush.msra.mxu0 %v144
    %533 = vmatpush.msra.mxu0 %v143
    %534 = vmatmul.f32.gmra.mxu0 %v516
    %v535 = vpop.f32.mrf.mxu0
    %v536 = vadd.f32 0.0, %v535
    %537 = vdwg.mxu0
    %v538 = vadd.f32 %v237, %v536
    %v539 = vsel %vm149, %v451, 0
    %541 = vmatpush.msra.mxu0 0.0
    %542 = vmatpush.msra.mxu0 0.0
    %543 = vmatpush.msra.mxu0 0.0
    %544 = vmatpush.msra.mxu0 0.0
    %545 = vmatpush.msra.mxu0 0.0
    %546 = vmatpush.msra.mxu0 0.0
    %547 = vmatpush.msra.mxu0 0.0
    %548 = vmatpush.msra.mxu0 0.0
    %549 = vmatpush.msra.mxu0 0.0
    %550 = vmatpush.msra.mxu0 0.0
    %551 = vmatpush.msra.mxu0 0.0
    %552 = vmatpush.msra.mxu0 0.0
    %553 = vmatpush.msra.mxu0 %v142
    %554 = vmatpush.msra.mxu0 %v141
    %555 = vmatpush.msra.mxu0 %v140
    %556 = vmatpush.msra.mxu0 %v139
    %557 = vmatmul.f32.gmra.mxu0 %v539
    %v558 = vpop.f32.mrf.mxu0
    %v559 = vadd.f32 0.0, %v558
    %560 = vdwg.mxu0
    %v561 = vadd.f32 %v538, %v559
    %v562 = vxor.u32 %v561, 2147483648
    %v563 = vmul.f32 %v562, 1.442695
    %v564 = vpow.pop %v563
    %v565 = vadd.f32 %v564, 1.0
    %v566 = vrcp.pop %v565
    %v567 = vmul.f32 %v565, %v566
    %v568 = vsub.f32 1.0, %v567
    %v569 = vmul.f32 %v566, %v568
    %v570 = vadd.f32 %v566, %v569
    %vm571 = vweird.f32 %v565
    %vm572 = vweird.f32 %v566
    %vm573 = vmor %vm571, %vm572
    %v574 = vsel %vm573, %v566, %v570
    %v575 = vand.u32 2147483647, %v565
    %vm576 = vcmp.eq.f32.partialorder %v575, 8.507059e+37
    %v577 = vand.u32 %v565, 2147483648
    %v578 = vor.u32 1.1754944e-38, %v577
    %v579 = vsel %vm576, %v578, %v574
    %v580 = vmul.f32 1.0, %v579
    %v581 = vtanh.pop %v561
    %v582 = vmul.f32 %v580, %v442
    %584 = vrot.lane.b32.xlu0 %v581, 32
    %v585 = vpop.permute.xlu0 %584
    %v587 = vmul.f32 %v580, %v585
    %589 = vrot.lane.b32.xlu0 %v587, 32
    %v590 = vpop.permute.xlu0 %589
    %v592 = vadd.f32 %v582, %v590
    %v593 = vtanh.pop %v592
    %595 = vrot.lane.b32.xlu0 %v593, 32
    %v596 = vpop.permute.xlu0 %595
    %v598 = vmul.f32 %v580, %v596
    %600 = vrot.lane.b32.xlu0 %v598, 64
    %v601 = vpop.permute.xlu0 %600
    %603 = vst.msk [vmem:[#allocation3 + $0x4] sm:$0x3] %vm302, %v601
    %v604 = vld [vmem:[#allocation2 + $0x6] sm:$0x3]
    %605 = vmatpush.msra.mxu0 0.0
    %606 = vmatpush.msra.mxu0 0.0
    %607 = vmatpush.msra.mxu0 0.0
    %608 = vmatpush.msra.mxu0 0.0
    %609 = vmatpush.msra.mxu0 0.0
    %610 = vmatpush.msra.mxu0 0.0
    %611 = vmatpush.msra.mxu0 0.0
    %612 = vmatpush.msra.mxu0 0.0
    %613 = vmatpush.msra.mxu0 0.0
    %614 = vmatpush.msra.mxu0 0.0
    %615 = vmatpush.msra.mxu0 0.0
    %616 = vmatpush.msra.mxu0 0.0
    %617 = vmatpush.msra.mxu0 %v138
    %618 = vmatpush.msra.mxu0 %v137
    %619 = vmatpush.msra.mxu0 %v136
    %620 = vmatpush.msra.mxu0 %v135
    %621 = vmatmul.f32.gmra.mxu0 %v516
    %v622 = vpop.f32.mrf.mxu0
    %v623 = vadd.f32 0.0, %v622
    %624 = vdwg.mxu0
    %v625 = vadd.f32 %v604, %v623
    %v626 = vxor.u32 %v625, 2147483648
    %v627 = vmul.f32 %v626, 1.442695
    %v628 = vpow.pop %v627
    %v629 = vadd.f32 %v628, 1.0
    %v630 = vrcp.pop %v629
    %v631 = vmul.f32 %v629, %v630
    %v632 = vsub.f32 1.0, %v631
    %v633 = vmul.f32 %v630, %v632
    %v634 = vadd.f32 %v630, %v633
    %vm635 = vweird.f32 %v629
    %vm636 = vweird.f32 %v630
    %vm637 = vmor %vm635, %vm636
    %v638 = vsel %vm637, %v630, %v634
    %v639 = vand.u32 2147483647, %v629
    %vm640 = vcmp.eq.f32.partialorder %v639, 8.507059e+37
    %v641 = vand.u32 %v629, 2147483648
    %v642 = vor.u32 1.1754944e-38, %v641
    %v643 = vsel %vm640, %v642, %v638
    %v644 = vmul.f32 1.0, %v643
    %v645 = vtanh.pop %v625
    %v646 = vmul.f32 %v644, %v506
    %648 = vrot.lane.b32.xlu0 %v645, 32
    %v649 = vpop.permute.xlu0 %648
    %v651 = vmul.f32 %v644, %v649
    %653 = vrot.lane.b32.xlu0 %v651, 32
    %v654 = vpop.permute.xlu0 %653
    %v656 = vadd.f32 %v646, %v654
    %v657 = vtanh.pop %v656
    %659 = vrot.lane.b32.xlu0 %v657, 32
    %v660 = vpop.permute.xlu0 %659
    %v662 = vmul.f32 %v644, %v660
    %664 = vrot.lane.b32.xlu0 %v662, 64
    %v665 = vpop.permute.xlu0 %664
    %v666 = vsel %vm149, %v665, 0
    %668 = vmatpush.msra.mxu0 0.0
    %669 = vmatpush.msra.mxu0 0.0
    %670 = vmatpush.msra.mxu0 0.0
    %671 = vmatpush.msra.mxu0 0.0
    %672 = vmatpush.msra.mxu0 0.0
    %673 = vmatpush.msra.mxu0 0.0
    %674 = vmatpush.msra.mxu0 0.0
    %675 = vmatpush.msra.mxu0 0.0
    %676 = vmatpush.msra.mxu0 0.0
    %677 = vmatpush.msra.mxu0 0.0
    %678 = vmatpush.msra.mxu0 0.0
    %679 = vmatpush.msra.mxu0 0.0
    %680 = vmatpush.msra.mxu0 %v146
    %681 = vmatpush.msra.mxu0 %v145
    %682 = vmatpush.msra.mxu0 %v144
    %683 = vmatpush.msra.mxu0 %v143
    %684 = vmatmul.f32.gmra.mxu0 %v666
    %v685 = vpop.f32.mrf.mxu0
    %v686 = vadd.f32 0.0, %v685
    %687 = vdwg.mxu0
    %v688 = vadd.f32 %v237, %v686
    %v689 = vsel %vm149, %v601, 0
    %691 = vmatpush.msra.mxu0 0.0
    %692 = vmatpush.msra.mxu0 0.0
    %693 = vmatpush.msra.mxu0 0.0
    %694 = vmatpush.msra.mxu0 0.0
    %695 = vmatpush.msra.mxu0 0.0
    %696 = vmatpush.msra.mxu0 0.0
    %697 = vmatpush.msra.mxu0 0.0
    %698 = vmatpush.msra.mxu0 0.0
    %699 = vmatpush.msra.mxu0 0.0
    %700 = vmatpush.msra.mxu0 0.0
    %701 = vmatpush.msra.mxu0 0.0
    %702 = vmatpush.msra.mxu0 0.0
    %703 = vmatpush.msra.mxu0 %v142
    %704 = vmatpush.msra.mxu0 %v141
    %705 = vmatpush.msra.mxu0 %v140
    %706 = vmatpush.msra.mxu0 %v139
    %707 = vmatmul.f32.gmra.mxu0 %v689
    %v708 = vpop.f32.mrf.mxu0
    %v709 = vadd.f32 0.0, %v708
    %710 = vdwg.mxu0
    %v711 = vadd.f32 %v688, %v709
    %v712 = vxor.u32 %v711, 2147483648
    %v713 = vmul.f32 %v712, 1.442695
    %v714 = vpow.pop %v713
    %v715 = vadd.f32 %v714, 1.0
    %v716 = vrcp.pop %v715
    %v717 = vmul.f32 %v715, %v716
    %v718 = vsub.f32 1.0, %v717
    %v719 = vmul.f32 %v716, %v718
    %v720 = vadd.f32 %v716, %v719
    %vm721 = vweird.f32 %v715
    %vm722 = vweird.f32 %v716
    %vm723 = vmor %vm721, %vm722
    %v724 = vsel %vm723, %v716, %v720
    %v725 = vand.u32 2147483647, %v715
    %vm726 = vcmp.eq.f32.partialorder %v725, 8.507059e+37
    %v727 = vand.u32 %v715, 2147483648
    %v728 = vor.u32 1.1754944e-38, %v727
    %v729 = vsel %vm726, %v728, %v724
    %v730 = vmul.f32 1.0, %v729
    %v731 = vtanh.pop %v711
    %v732 = vmul.f32 %v730, %v592
    %734 = vrot.lane.b32.xlu0 %v731, 32
    %v735 = vpop.permute.xlu0 %734
    %v737 = vmul.f32 %v730, %v735
    %739 = vrot.lane.b32.xlu0 %v737, 32
    %v740 = vpop.permute.xlu0 %739
    %v742 = vadd.f32 %v732, %v740
    %v743 = vtanh.pop %v742
    %745 = vrot.lane.b32.xlu0 %v743, 32
    %v746 = vpop.permute.xlu0 %745
    %v748 = vmul.f32 %v730, %v746
    %750 = vrot.lane.b32.xlu0 %v748, 64
    %v751 = vpop.permute.xlu0 %750
    %753 = vst.msk [vmem:[#allocation3 + $0x6] sm:$0x3] %vm302, %v751
    %v754 = vld [vmem:[#allocation2 + $0x8] sm:$0x3]
    %755 = vmatpush.msra.mxu0 0.0
    %756 = vmatpush.msra.mxu0 0.0
    %757 = vmatpush.msra.mxu0 0.0
    %758 = vmatpush.msra.mxu0 0.0
    %759 = vmatpush.msra.mxu0 0.0
    %760 = vmatpush.msra.mxu0 0.0
    %761 = vmatpush.msra.mxu0 0.0
    %762 = vmatpush.msra.mxu0 0.0
    %763 = vmatpush.msra.mxu0 0.0
    %764 = vmatpush.msra.mxu0 0.0
    %765 = vmatpush.msra.mxu0 0.0
    %766 = vmatpush.msra.mxu0 0.0
    %767 = vmatpush.msra.mxu0 %v138
    %768 = vmatpush.msra.mxu0 %v137
    %769 = vmatpush.msra.mxu0 %v136
    %770 = vmatpush.msra.mxu0 %v135
    %771 = vmatmul.f32.gmra.mxu0 %v666
    %v772 = vpop.f32.mrf.mxu0
    %v773 = vadd.f32 0.0, %v772
    %774 = vdwg.mxu0
    %v775 = vadd.f32 %v754, %v773
    %v776 = vxor.u32 %v775, 2147483648
    %v777 = vmul.f32 %v776, 1.442695
    %v778 = vpow.pop %v777
    %v779 = vadd.f32 %v778, 1.0
    %v780 = vrcp.pop %v779
    %v781 = vmul.f32 %v779, %v780
    %v782 = vsub.f32 1.0, %v781
    %v783 = vmul.f32 %v780, %v782
    %v784 = vadd.f32 %v780, %v783
    %vm785 = vweird.f32 %v779
    %vm786 = vweird.f32 %v780
    %vm787 = vmor %vm785, %vm786
    %v788 = vsel %vm787, %v780, %v784
    %v789 = vand.u32 2147483647, %v779
    %vm790 = vcmp.eq.f32.partialorder %v789, 8.507059e+37
    %v791 = vand.u32 %v779, 2147483648
    %v792 = vor.u32 1.1754944e-38, %v791
    %v793 = vsel %vm790, %v792, %v788
    %v794 = vmul.f32 1.0, %v793
    %v795 = vtanh.pop %v775
    %v796 = vmul.f32 %v794, %v656
    %798 = vrot.lane.b32.xlu0 %v795, 32
    %v799 = vpop.permute.xlu0 %798
    %v801 = vmul.f32 %v794, %v799
    %803 = vrot.lane.b32.xlu0 %v801, 32
    %v804 = vpop.permute.xlu0 %803
    %v806 = vadd.f32 %v796, %v804
    %v807 = vtanh.pop %v806
    %809 = vrot.lane.b32.xlu0 %v807, 32
    %v810 = vpop.permute.xlu0 %809
    %v812 = vmul.f32 %v794, %v810
    %814 = vrot.lane.b32.xlu0 %v812, 64
    %v815 = vpop.permute.xlu0 %814
    %v816 = vsel %vm149, %v815, 0
    %818 = vmatpush.msra.mxu0 0.0
    %819 = vmatpush.msra.mxu0 0.0
    %820 = vmatpush.msra.mxu0 0.0
    %821 = vmatpush.msra.mxu0 0.0
    %822 = vmatpush.msra.mxu0 0.0
    %823 = vmatpush.msra.mxu0 0.0
    %824 = vmatpush.msra.mxu0 0.0
    %825 = vmatpush.msra.mxu0 0.0
    %826 = vmatpush.msra.mxu0 0.0
    %827 = vmatpush.msra.mxu0 0.0
    %828 = vmatpush.msra.mxu0 0.0
    %829 = vmatpush.msra.mxu0 0.0
    %830 = vmatpush.msra.mxu0 %v146
    %831 = vmatpush.msra.mxu0 %v145
    %832 = vmatpush.msra.mxu0 %v144
    %833 = vmatpush.msra.mxu0 %v143
    %834 = vmatmul.f32.gmra.mxu0 %v816
    %v835 = vpop.f32.mrf.mxu0
    %v836 = vadd.f32 0.0, %v835
    %837 = vdwg.mxu0
    %v838 = vadd.f32 %v237, %v836
    %v839 = vsel %vm149, %v751, 0
    %841 = vmatpush.msra.mxu0 0.0
    %842 = vmatpush.msra.mxu0 0.0
    %843 = vmatpush.msra.mxu0 0.0
    %844 = vmatpush.msra.mxu0 0.0
    %845 = vmatpush.msra.mxu0 0.0
    %846 = vmatpush.msra.mxu0 0.0
    %847 = vmatpush.msra.mxu0 0.0
    %848 = vmatpush.msra.mxu0 0.0
    %849 = vmatpush.msra.mxu0 0.0
    %850 = vmatpush.msra.mxu0 0.0
    %851 = vmatpush.msra.mxu0 0.0
    %852 = vmatpush.msra.mxu0 0.0
    %853 = vmatpush.msra.mxu0 %v142
    %854 = vmatpush.msra.mxu0 %v141
    %855 = vmatpush.msra.mxu0 %v140
    %856 = vmatpush.msra.mxu0 %v139
    %857 = vmatmul.f32.gmra.mxu0 %v839
    %v858 = vpop.f32.mrf.mxu0
    %v859 = vadd.f32 0.0, %v858
    %860 = vdwg.mxu0
    %v861 = vadd.f32 %v838, %v859
    %v862 = vxor.u32 %v861, 2147483648
    %v863 = vmul.f32 %v862, 1.442695
    %v864 = vpow.pop %v863
    %v865 = vadd.f32 %v864, 1.0
    %v866 = vrcp.pop %v865
    %v867 = vmul.f32 %v865, %v866
    %v868 = vsub.f32 1.0, %v867
    %v869 = vmul.f32 %v866, %v868
    %v870 = vadd.f32 %v866, %v869
    %vm871 = vweird.f32 %v865
    %vm872 = vweird.f32 %v866
    %vm873 = vmor %vm871, %vm872
    %v874 = vsel %vm873, %v866, %v870
    %v875 = vand.u32 2147483647, %v865
    %vm876 = vcmp.eq.f32.partialorder %v875, 8.507059e+37
    %v877 = vand.u32 %v865, 2147483648
    %v878 = vor.u32 1.1754944e-38, %v877
    %v879 = vsel %vm876, %v878, %v874
    %v880 = vmul.f32 1.0, %v879
    %v881 = vtanh.pop %v861
    %v882 = vmul.f32 %v880, %v742
    %884 = vrot.lane.b32.xlu0 %v881, 32
    %v885 = vpop.permute.xlu0 %884
    %v887 = vmul.f32 %v880, %v885
    %889 = vrot.lane.b32.xlu0 %v887, 32
    %v890 = vpop.permute.xlu0 %889
    %v892 = vadd.f32 %v882, %v890
    %v893 = vtanh.pop %v892
    %895 = vrot.lane.b32.xlu0 %v893, 32
    %v896 = vpop.permute.xlu0 %895
    %v898 = vmul.f32 %v880, %v896
    %900 = vrot.lane.b32.xlu0 %v898, 64
    %v901 = vpop.permute.xlu0 %900
    %903 = vst.msk [vmem:[#allocation3 + $0x8] sm:$0x3] %vm302, %v901
    %v904 = vld [vmem:[#allocation2 + $0xa] sm:$0x3]
    %905 = vmatpush.msra.mxu0 0.0
    %906 = vmatpush.msra.mxu0 0.0
    %907 = vmatpush.msra.mxu0 0.0
    %908 = vmatpush.msra.mxu0 0.0
    %909 = vmatpush.msra.mxu0 0.0
    %910 = vmatpush.msra.mxu0 0.0
    %911 = vmatpush.msra.mxu0 0.0
    %912 = vmatpush.msra.mxu0 0.0
    %913 = vmatpush.msra.mxu0 0.0
    %914 = vmatpush.msra.mxu0 0.0
    %915 = vmatpush.msra.mxu0 0.0
    %916 = vmatpush.msra.mxu0 0.0
    %917 = vmatpush.msra.mxu0 %v138
    %918 = vmatpush.msra.mxu0 %v137
    %919 = vmatpush.msra.mxu0 %v136
    %920 = vmatpush.msra.mxu0 %v135
    %921 = vmatmul.f32.gmra.mxu0 %v816
    %v922 = vpop.f32.mrf.mxu0
    %v923 = vadd.f32 0.0, %v922
    %924 = vdwg.mxu0
    %v925 = vadd.f32 %v904, %v923
    %v926 = vxor.u32 %v925, 2147483648
    %v927 = vmul.f32 %v926, 1.442695
    %v928 = vpow.pop %v927
    %v929 = vadd.f32 %v928, 1.0
    %v930 = vrcp.pop %v929
    %v931 = vmul.f32 %v929, %v930
    %v932 = vsub.f32 1.0, %v931
    %v933 = vmul.f32 %v930, %v932
    %v934 = vadd.f32 %v930, %v933
    %vm935 = vweird.f32 %v929
    %vm936 = vweird.f32 %v930
    %vm937 = vmor %vm935, %vm936
    %v938 = vsel %vm937, %v930, %v934
    %v939 = vand.u32 2147483647, %v929
    %vm940 = vcmp.eq.f32.partialorder %v939, 8.507059e+37
    %v941 = vand.u32 %v929, 2147483648
    %v942 = vor.u32 1.1754944e-38, %v941
    %v943 = vsel %vm940, %v942, %v938
    %v944 = vmul.f32 1.0, %v943
    %v945 = vtanh.pop %v925
    %v946 = vmul.f32 %v944, %v806
    %948 = vrot.lane.b32.xlu0 %v945, 32
    %v949 = vpop.permute.xlu0 %948
    %v951 = vmul.f32 %v944, %v949
    %953 = vrot.lane.b32.xlu0 %v951, 32
    %v954 = vpop.permute.xlu0 %953
    %v956 = vadd.f32 %v946, %v954
    %v957 = vtanh.pop %v956
    %959 = vrot.lane.b32.xlu0 %v957, 32
    %v960 = vpop.permute.xlu0 %959
    %v962 = vmul.f32 %v944, %v960
    %964 = vrot.lane.b32.xlu0 %v962, 64
    %v965 = vpop.permute.xlu0 %964
    %v966 = vsel %vm149, %v965, 0
    %968 = vmatpush.msra.mxu0 0.0
    %969 = vmatpush.msra.mxu0 0.0
    %970 = vmatpush.msra.mxu0 0.0
    %971 = vmatpush.msra.mxu0 0.0
    %972 = vmatpush.msra.mxu0 0.0
    %973 = vmatpush.msra.mxu0 0.0
    %974 = vmatpush.msra.mxu0 0.0
    %975 = vmatpush.msra.mxu0 0.0
    %976 = vmatpush.msra.mxu0 0.0
    %977 = vmatpush.msra.mxu0 0.0
    %978 = vmatpush.msra.mxu0 0.0
    %979 = vmatpush.msra.mxu0 0.0
    %980 = vmatpush.msra.mxu0 %v146
    %981 = vmatpush.msra.mxu0 %v145
    %982 = vmatpush.msra.mxu0 %v144
    %983 = vmatpush.msra.mxu0 %v143
    %984 = vmatmul.f32.gmra.mxu0 %v966
    %v985 = vpop.f32.mrf.mxu0
    %v986 = vadd.f32 0.0, %v985
    %987 = vdwg.mxu0
    %v988 = vadd.f32 %v237, %v986
    %v989 = vsel %vm149, %v901, 0
    %991 = vmatpush.msra.mxu0 0.0
    %992 = vmatpush.msra.mxu0 0.0
    %993 = vmatpush.msra.mxu0 0.0
    %994 = vmatpush.msra.mxu0 0.0
    %995 = vmatpush.msra.mxu0 0.0
    %996 = vmatpush.msra.mxu0 0.0
    %997 = vmatpush.msra.mxu0 0.0
    %998 = vmatpush.msra.mxu0 0.0
    %999 = vmatpush.msra.mxu0 0.0
    %1000 = vmatpush.msra.mxu0 0.0
    %1001 = vmatpush.msra.mxu0 0.0
    %1002 = vmatpush.msra.mxu0 0.0
    %1003 = vmatpush.msra.mxu0 %v142
    %1004 = vmatpush.msra.mxu0 %v141
    %1005 = vmatpush.msra.mxu0 %v140
    %1006 = vmatpush.msra.mxu0 %v139
    %1007 = vmatmul.f32.gmra.mxu0 %v989
    %v1008 = vpop.f32.mrf.mxu0
    %v1009 = vadd.f32 0.0, %v1008
    %1010 = vdwg.mxu0
    %v1011 = vadd.f32 %v988, %v1009
    %v1012 = vxor.u32 %v1011, 2147483648
    %v1013 = vmul.f32 %v1012, 1.442695
    %v1014 = vpow.pop %v1013
    %v1015 = vadd.f32 %v1014, 1.0
    %v1016 = vrcp.pop %v1015
    %v1017 = vmul.f32 %v1015, %v1016
    %v1018 = vsub.f32 1.0, %v1017
    %v1019 = vmul.f32 %v1016, %v1018
    %v1020 = vadd.f32 %v1016, %v1019
    %vm1021 = vweird.f32 %v1015
    %vm1022 = vweird.f32 %v1016
    %vm1023 = vmor %vm1021, %vm1022
    %v1024 = vsel %vm1023, %v1016, %v1020
    %v1025 = vand.u32 2147483647, %v1015
    %vm1026 = vcmp.eq.f32.partialorder %v1025, 8.507059e+37
    %v1027 = vand.u32 %v1015, 2147483648
    %v1028 = vor.u32 1.1754944e-38, %v1027
    %v1029 = vsel %vm1026, %v1028, %v1024
    %v1030 = vmul.f32 1.0, %v1029
    %v1031 = vtanh.pop %v1011
    %v1032 = vmul.f32 %v1030, %v892
    %1034 = vrot.lane.b32.xlu0 %v1031, 32
    %v1035 = vpop.permute.xlu0 %1034
    %v1037 = vmul.f32 %v1030, %v1035
    %1039 = vrot.lane.b32.xlu0 %v1037, 32
    %v1040 = vpop.permute.xlu0 %1039
    %v1042 = vadd.f32 %v1032, %v1040
    %v1043 = vtanh.pop %v1042
    %1045 = vrot.lane.b32.xlu0 %v1043, 32
    %v1046 = vpop.permute.xlu0 %1045
    %v1048 = vmul.f32 %v1030, %v1046
    %1050 = vrot.lane.b32.xlu0 %v1048, 64
    %v1051 = vpop.permute.xlu0 %1050
    %1053 = vst.msk [vmem:[#allocation3 + $0xa] sm:$0x3] %vm302, %v1051
    %v1054 = vld [vmem:[#allocation2 + $0xc] sm:$0x3]
    %1055 = vmatpush.msra.mxu0 0.0
    %1056 = vmatpush.msra.mxu0 0.0
    %1057 = vmatpush.msra.mxu0 0.0
    %1058 = vmatpush.msra.mxu0 0.0
    %1059 = vmatpush.msra.mxu0 0.0
    %1060 = vmatpush.msra.mxu0 0.0
    %1061 = vmatpush.msra.mxu0 0.0
    %1062 = vmatpush.msra.mxu0 0.0
    %1063 = vmatpush.msra.mxu0 0.0
    %1064 = vmatpush.msra.mxu0 0.0
    %1065 = vmatpush.msra.mxu0 0.0
    %1066 = vmatpush.msra.mxu0 0.0
    %1067 = vmatpush.msra.mxu0 %v138
    %1068 = vmatpush.msra.mxu0 %v137
    %1069 = vmatpush.msra.mxu0 %v136
    %1070 = vmatpush.msra.mxu0 %v135
    %1071 = vmatmul.f32.gmra.mxu0 %v966
    %v1072 = vpop.f32.mrf.mxu0
    %v1073 = vadd.f32 0.0, %v1072
    %1074 = vdwg.mxu0
    %v1075 = vadd.f32 %v1054, %v1073
    %v1076 = vxor.u32 %v1075, 2147483648
    %v1077 = vmul.f32 %v1076, 1.442695
    %v1078 = vpow.pop %v1077
    %v1079 = vadd.f32 %v1078, 1.0
    %v1080 = vrcp.pop %v1079
    %v1081 = vmul.f32 %v1079, %v1080
    %v1082 = vsub.f32 1.0, %v1081
    %v1083 = vmul.f32 %v1080, %v1082
    %v1084 = vadd.f32 %v1080, %v1083
    %vm1085 = vweird.f32 %v1079
    %vm1086 = vweird.f32 %v1080
    %vm1087 = vmor %vm1085, %vm1086
    %v1088 = vsel %vm1087, %v1080, %v1084
    %v1089 = vand.u32 2147483647, %v1079
    %vm1090 = vcmp.eq.f32.partialorder %v1089, 8.507059e+37
    %v1091 = vand.u32 %v1079, 2147483648
    %v1092 = vor.u32 1.1754944e-38, %v1091
    %v1093 = vsel %vm1090, %v1092, %v1088
    %v1094 = vmul.f32 1.0, %v1093
    %v1095 = vtanh.pop %v1075
    %v1096 = vmul.f32 %v1094, %v956
    %1098 = vrot.lane.b32.xlu0 %v1095, 32
    %v1099 = vpop.permute.xlu0 %1098
    %v1101 = vmul.f32 %v1094, %v1099
    %1103 = vrot.lane.b32.xlu0 %v1101, 32
    %v1104 = vpop.permute.xlu0 %1103
    %v1106 = vadd.f32 %v1096, %v1104
    %v1107 = vtanh.pop %v1106
    %1109 = vrot.lane.b32.xlu0 %v1107, 32
    %v1110 = vpop.permute.xlu0 %1109
    %v1112 = vmul.f32 %v1094, %v1110
    %1114 = vrot.lane.b32.xlu0 %v1112, 64
    %v1115 = vpop.permute.xlu0 %1114
    %v1116 = vsel %vm149, %v1115, 0
    %1118 = vmatpush.msra.mxu0 0.0
    %1119 = vmatpush.msra.mxu0 0.0
    %1120 = vmatpush.msra.mxu0 0.0
    %1121 = vmatpush.msra.mxu0 0.0
    %1122 = vmatpush.msra.mxu0 0.0
    %1123 = vmatpush.msra.mxu0 0.0
    %1124 = vmatpush.msra.mxu0 0.0
    %1125 = vmatpush.msra.mxu0 0.0
    %1126 = vmatpush.msra.mxu0 0.0
    %1127 = vmatpush.msra.mxu0 0.0
    %1128 = vmatpush.msra.mxu0 0.0
    %1129 = vmatpush.msra.mxu0 0.0
    %1130 = vmatpush.msra.mxu0 %v146
    %1131 = vmatpush.msra.mxu0 %v145
    %1132 = vmatpush.msra.mxu0 %v144
    %1133 = vmatpush.msra.mxu0 %v143
    %1134 = vmatmul.f32.gmra.mxu0 %v1116
    %v1135 = vpop.f32.mrf.mxu0
    %v1136 = vadd.f32 0.0, %v1135
    %1137 = vdwg.mxu0
    %v1138 = vadd.f32 %v237, %v1136
    %v1139 = vsel %vm149, %v1051, 0
    %1141 = vmatpush.msra.mxu0 0.0
    %1142 = vmatpush.msra.mxu0 0.0
    %1143 = vmatpush.msra.mxu0 0.0
    %1144 = vmatpush.msra.mxu0 0.0
    %1145 = vmatpush.msra.mxu0 0.0
    %1146 = vmatpush.msra.mxu0 0.0
    %1147 = vmatpush.msra.mxu0 0.0
    %1148 = vmatpush.msra.mxu0 0.0
    %1149 = vmatpush.msra.mxu0 0.0
    %1150 = vmatpush.msra.mxu0 0.0
    %1151 = vmatpush.msra.mxu0 0.0
    %1152 = vmatpush.msra.mxu0 0.0
    %1153 = vmatpush.msra.mxu0 %v142
    %1154 = vmatpush.msra.mxu0 %v141
    %1155 = vmatpush.msra.mxu0 %v140
    %1156 = vmatpush.msra.mxu0 %v139
    %1157 = vmatmul.f32.gmra.mxu0 %v1139
    %v1158 = vpop.f32.mrf.mxu0
    %v1159 = vadd.f32 0.0, %v1158
    %1160 = vdwg.mxu0
    %v1161 = vadd.f32 %v1138, %v1159
    %v1162 = vxor.u32 %v1161, 2147483648
    %v1163 = vmul.f32 %v1162, 1.442695
    %v1164 = vpow.pop %v1163
    %v1165 = vadd.f32 %v1164, 1.0
    %v1166 = vrcp.pop %v1165
    %v1167 = vmul.f32 %v1165, %v1166
    %v1168 = vsub.f32 1.0, %v1167
    %v1169 = vmul.f32 %v1166, %v1168
    %v1170 = vadd.f32 %v1166, %v1169
    %vm1171 = vweird.f32 %v1165
    %vm1172 = vweird.f32 %v1166
    %vm1173 = vmor %vm1171, %vm1172
    %v1174 = vsel %vm1173, %v1166, %v1170
    %v1175 = vand.u32 2147483647, %v1165
    %vm1176 = vcmp.eq.f32.partialorder %v1175, 8.507059e+37
    %v1177 = vand.u32 %v1165, 2147483648
    %v1178 = vor.u32 1.1754944e-38, %v1177
    %v1179 = vsel %vm1176, %v1178, %v1174
    %v1180 = vmul.f32 1.0, %v1179
    %v1181 = vtanh.pop %v1161
    %v1182 = vmul.f32 %v1180, %v1042
    %1184 = vrot.lane.b32.xlu0 %v1181, 32
    %v1185 = vpop.permute.xlu0 %1184
    %v1187 = vmul.f32 %v1180, %v1185
    %1189 = vrot.lane.b32.xlu0 %v1187, 32
    %v1190 = vpop.permute.xlu0 %1189
    %v1192 = vadd.f32 %v1182, %v1190
    %v1193 = vtanh.pop %v1192
    %1195 = vrot.lane.b32.xlu0 %v1193, 32
    %v1196 = vpop.permute.xlu0 %1195
    %v1198 = vmul.f32 %v1180, %v1196
    %1200 = vrot.lane.b32.xlu0 %v1198, 64
    %v1201 = vpop.permute.xlu0 %1200
    %1203 = vst.msk [vmem:[#allocation3 + $0xc] sm:$0x3] %vm302, %v1201
    %v1204 = vld [vmem:[#allocation2 + $0xe] sm:$0x3]
    %1205 = vmatpush.msra.mxu0 0.0
    %1206 = vmatpush.msra.mxu0 0.0
    %1207 = vmatpush.msra.mxu0 0.0
    %1208 = vmatpush.msra.mxu0 0.0
    %1209 = vmatpush.msra.mxu0 0.0
    %1210 = vmatpush.msra.mxu0 0.0
    %1211 = vmatpush.msra.mxu0 0.0
    %1212 = vmatpush.msra.mxu0 0.0
    %1213 = vmatpush.msra.mxu0 0.0
    %1214 = vmatpush.msra.mxu0 0.0
    %1215 = vmatpush.msra.mxu0 0.0
    %1216 = vmatpush.msra.mxu0 0.0
    %1217 = vmatpush.msra.mxu0 %v138
    %1218 = vmatpush.msra.mxu0 %v137
    %1219 = vmatpush.msra.mxu0 %v136
    %1220 = vmatpush.msra.mxu0 %v135
    %1221 = vmatmul.f32.gmra.mxu0 %v1116
    %v1222 = vpop.f32.mrf.mxu0
    %v1223 = vadd.f32 0.0, %v1222
    %1224 = vdwg.mxu0
    %v1225 = vadd.f32 %v1204, %v1223
    %v1226 = vxor.u32 %v1225, 2147483648
    %v1227 = vmul.f32 %v1226, 1.442695
    %v1228 = vpow.pop %v1227
    %v1229 = vadd.f32 %v1228, 1.0
    %v1230 = vrcp.pop %v1229
    %v1231 = vmul.f32 %v1229, %v1230
    %v1232 = vsub.f32 1.0, %v1231
    %v1233 = vmul.f32 %v1230, %v1232
    %v1234 = vadd.f32 %v1230, %v1233
    %vm1235 = vweird.f32 %v1229
    %vm1236 = vweird.f32 %v1230
    %vm1237 = vmor %vm1235, %vm1236
    %v1238 = vsel %vm1237, %v1230, %v1234
    %v1239 = vand.u32 2147483647, %v1229
    %vm1240 = vcmp.eq.f32.partialorder %v1239, 8.507059e+37
    %v1241 = vand.u32 %v1229, 2147483648
    %v1242 = vor.u32 1.1754944e-38, %v1241
    %v1243 = vsel %vm1240, %v1242, %v1238
    %v1244 = vmul.f32 1.0, %v1243
    %v1245 = vtanh.pop %v1225
    %v1246 = vmul.f32 %v1244, %v1106
    %1248 = vrot.lane.b32.xlu0 %v1245, 32
    %v1249 = vpop.permute.xlu0 %1248
    %v1251 = vmul.f32 %v1244, %v1249
    %1253 = vrot.lane.b32.xlu0 %v1251, 32
    %v1254 = vpop.permute.xlu0 %1253
    %v1256 = vadd.f32 %v1246, %v1254
    %v1257 = vtanh.pop %v1256
    %1259 = vrot.lane.b32.xlu0 %v1257, 32
    %v1260 = vpop.permute.xlu0 %1259
    %v1262 = vmul.f32 %v1244, %v1260
    %1264 = vrot.lane.b32.xlu0 %v1262, 64
    %v1265 = vpop.permute.xlu0 %1264
    %v1266 = vsel %vm149, %v1265, 0
    %1268 = vmatpush.msra.mxu0 0.0
    %1269 = vmatpush.msra.mxu0 0.0
    %1270 = vmatpush.msra.mxu0 0.0
    %1271 = vmatpush.msra.mxu0 0.0
    %1272 = vmatpush.msra.mxu0 0.0
    %1273 = vmatpush.msra.mxu0 0.0
    %1274 = vmatpush.msra.mxu0 0.0
    %1275 = vmatpush.msra.mxu0 0.0
    %1276 = vmatpush.msra.mxu0 0.0
    %1277 = vmatpush.msra.mxu0 0.0
    %1278 = vmatpush.msra.mxu0 0.0
    %1279 = vmatpush.msra.mxu0 0.0
    %1280 = vmatpush.msra.mxu0 %v146
    %1281 = vmatpush.msra.mxu0 %v145
    %1282 = vmatpush.msra.mxu0 %v144
    %1283 = vmatpush.msra.mxu0 %v143
    %1284 = vmatmul.f32.gmra.mxu0 %v1266
    %v1285 = vpop.f32.mrf.mxu0
    %v1286 = vadd.f32 0.0, %v1285
    %1287 = vdwg.mxu0
    %v1288 = vadd.f32 %v237, %v1286
    %v1289 = vsel %vm149, %v1201, 0
    %1291 = vmatpush.msra.mxu0 0.0
    %1292 = vmatpush.msra.mxu0 0.0
    %1293 = vmatpush.msra.mxu0 0.0
    %1294 = vmatpush.msra.mxu0 0.0
    %1295 = vmatpush.msra.mxu0 0.0
    %1296 = vmatpush.msra.mxu0 0.0
    %1297 = vmatpush.msra.mxu0 0.0
    %1298 = vmatpush.msra.mxu0 0.0
    %1299 = vmatpush.msra.mxu0 0.0
    %1300 = vmatpush.msra.mxu0 0.0
    %1301 = vmatpush.msra.mxu0 0.0
    %1302 = vmatpush.msra.mxu0 0.0
    %1303 = vmatpush.msra.mxu0 %v142
    %1304 = vmatpush.msra.mxu0 %v141
    %1305 = vmatpush.msra.mxu0 %v140
    %1306 = vmatpush.msra.mxu0 %v139
    %1307 = vmatmul.f32.gmra.mxu0 %v1289
    %v1308 = vpop.f32.mrf.mxu0
    %v1309 = vadd.f32 0.0, %v1308
    %1310 = vdwg.mxu0
    %v1311 = vadd.f32 %v1288, %v1309
    %v1312 = vxor.u32 %v1311, 2147483648
    %v1313 = vmul.f32 %v1312, 1.442695
    %v1314 = vpow.pop %v1313
    %v1315 = vadd.f32 %v1314, 1.0
    %v1316 = vrcp.pop %v1315
    %v1317 = vmul.f32 %v1315, %v1316
    %v1318 = vsub.f32 1.0, %v1317
    %v1319 = vmul.f32 %v1316, %v1318
    %v1320 = vadd.f32 %v1316, %v1319
    %vm1321 = vweird.f32 %v1315
    %vm1322 = vweird.f32 %v1316
    %vm1323 = vmor %vm1321, %vm1322
    %v1324 = vsel %vm1323, %v1316, %v1320
    %v1325 = vand.u32 2147483647, %v1315
    %vm1326 = vcmp.eq.f32.partialorder %v1325, 8.507059e+37
    %v1327 = vand.u32 %v1315, 2147483648
    %v1328 = vor.u32 1.1754944e-38, %v1327
    %v1329 = vsel %vm1326, %v1328, %v1324
    %v1330 = vmul.f32 1.0, %v1329
    %v1331 = vtanh.pop %v1311
    %v1332 = vmul.f32 %v1330, %v1192
    %1334 = vrot.lane.b32.xlu0 %v1331, 32
    %v1335 = vpop.permute.xlu0 %1334
    %v1337 = vmul.f32 %v1330, %v1335
    %1339 = vrot.lane.b32.xlu0 %v1337, 32
    %v1340 = vpop.permute.xlu0 %1339
    %v1342 = vadd.f32 %v1332, %v1340
    %v1343 = vtanh.pop %v1342
    %1345 = vrot.lane.b32.xlu0 %v1343, 32
    %v1346 = vpop.permute.xlu0 %1345
    %v1348 = vmul.f32 %v1330, %v1346
    %1350 = vrot.lane.b32.xlu0 %v1348, 64
    %v1351 = vpop.permute.xlu0 %1350
    %1353 = vst.msk [vmem:[#allocation3 + $0xe] sm:$0x3] %vm302, %v1351
    %v1354 = vld [vmem:[#allocation3] sm:$0xff]
    %v1355 = vld [vmem:[#allocation3 + $0x8] sm:$0xff]
    %v1356 = vmax.f32 %v1354, 0.0
    %v1357 = vmax.f32 %v1355, 0.0
    %v1358 = vld [vmem:[#allocation9] sm:$0xff]
    %v1359 = vld [vmem:[#allocation9 + $0x8] sm:$0xff]
    %v1360 = vld [vmem:[#allocation9 + $0x10] sm:$0xff]
    %v1361 = vld [vmem:[#allocation9 + $0x18] sm:$0xff]
    %v1362 = vld [vmem:[%s8] sm:$0x1]
    %v1364 = vperm.slane %v1362, 0
    %v1367 = vsel %vm149, %v1356, 0
    %v1370 = vsel %vm149, %v1357, 0
    %1372 = vmatpush.msra.mxu0 0.0
    %1373 = vmatpush.msra.mxu0 0.0
    %1374 = vmatpush.msra.mxu0 0.0
    %1375 = vmatpush.msra.mxu0 0.0
    %1376 = vmatpush.msra.mxu0 0.0
    %1377 = vmatpush.msra.mxu0 0.0
    %1378 = vmatpush.msra.mxu0 0.0
    %1379 = vmatpush.msra.mxu0 0.0
    %1380 = vmatpush.msra.mxu0 0.0
    %1381 = vmatpush.msra.mxu0 0.0
    %1382 = vmatpush.msra.mxu0 0.0
    %1383 = vmatpush.msra.mxu0 0.0
    %1384 = vmatpush.msra.mxu0 %v1361
    %1385 = vmatpush.msra.mxu0 %v1360
    %1386 = vmatpush.msra.mxu0 %v1359
    %1387 = vmatpush.msra.mxu0 %v1358
    %1388 = vmatmul.f32.gmra.mxu0 %v1367
    %v1389 = vpop.f32.mrf.mxu0
    %v1390 = vadd.f32 %v1364, %v1389
    %1391 = vmatmul.f32.gmra.mxu0 %v1370
    %v1392 = vpop.f32.mrf.mxu0
    %v1393 = vadd.f32 %v1364, %v1392
    %1394 = vdwg.mxu0
    %1395 = vst [vmem:[%s9] sm:$0xff] %v1390
    %1396 = vst [vmem:[%s9 + $0x8] sm:$0xff] %v1393
    // Predicated region
    $region54: #{lstm_model_forward.1} parent=1 // pred_check
      _
    $region55: #{lstm_model_forward.1} parent=1 // pred_check_branch
      %1398 = sbr.rel (0) target = $region57
    $region56: #{lstm_model_forward.1} parent=1 // pred_region
      _
    $region57: #{lstm_model_forward.1} parent=1 // pred_fallthru
      _
    // Predicated region
    $region58: #{lstm_model_forward.1} parent=1 // pred_check
      _
    $region59: #{lstm_model_forward.1} parent=1 // pred_check_branch
      %1400 = sbr.rel (0) target = $region61
    $region60: #{lstm_model_forward.1} parent=1 // pred_region
      _
    $region61: #{lstm_model_forward.1} parent=1 // pred_fallthru
      _
    %1401 = vsyncpa [#allocation5], 1
    %1402 = vsyncpa [#allocation7], 1
    %1403 = vsyncpa [#allocation10], 1

</llo_original>
